<compile_context>
chip_gen: v5e
topology: v5e:2x2
jax: 0.10.0
libtpu: 0.0.40
codegen_flags: <defaults>
</compile_context>

<pallas_src>
import jax
import jax.numpy as jnp
from jax.experimental import pallas as pl
from jax.experimental.pallas import tpu as pltpu


# ----------------------------- Pallas kernel ------------------------------ #

def _make_gru_kernel(T, B, H, num_layers):
    """Fused multi-layer GRU kernel operating on 2-D, time-major tiles."""

    def kernel(*refs):
        # refs = [x, (w_ih, w_hh, bx, bhn) * L, out, gx_scratch]
        x_ref = refs[0]
        out_ref = refs[1 + 4 * num_layers]        # (T*B, H)  output / activation
        gx_ref = refs[2 + 4 * num_layers]         # VMEM scratch (T*B, 3H)

        for layer in range(num_layers):
            base = 1 + 4 * layer
            w_ih = refs[base][...]                # (Din, 3H)
            w_hh = refs[base + 1][...]            # (H, 3H)
            bx = refs[base + 2][...]              # (1, 3H)  [b_ir+b_hr | b_iz+b_hz | b_in]
            bhn = refs[base + 3][...]             # (1, H)   b_hn (gated by r)

            # Hoist all input projections out of the recurrence: one big matmul.
            cur = x_ref[...] if layer == 0 else out_ref[...]
            gx_ref[...] = jnp.dot(cur, w_ih,
                                  preferred_element_type=jnp.float32) + bx

            def step(t, h, w_hh=w_hh, bhn=bhn):
                gx = gx_ref[pl.ds(t * B, B), :]                        # (B, 3H)
                gh = jnp.dot(h, w_hh, preferred_element_type=jnp.float32)
                r = jax.nn.sigmoid(gx[:, 0 * H:1 * H] + gh[:, 0 * H:1 * H])
                z = jax.nn.sigmoid(gx[:, 1 * H:2 * H] + gh[:, 1 * H:2 * H])
                n = jnp.tanh(gx[:, 2 * H:3 * H] + r * (gh[:, 2 * H:3 * H] + bhn))
                h_new = (1.0 - z) * n + z * h
                # out_ref doubles as the inter-layer activation buffer; the
                # previous layer's contents were fully consumed into gx_ref.
                out_ref[pl.ds(t * B, B), :] = h_new.astype(out_ref.dtype)
                return h_new

            jax.lax.fori_loop(0, T, step, jnp.zeros((B, H), jnp.float32),
                              unroll=True)

    return kernel


def mod_gru_forward(x_btd, layer_params):
    """Equivalent of mod_gru.forward: (B, T, input_dim) -> (B, T, H)."""
    B, T, Din0 = x_btd.shape
    H = layer_params[0]["w_hh"].shape[0]
    L = len(layer_params)

    # Time-major, flattened to 2-D so the kernel only touches 2-D tiles.
    x_flat = jnp.transpose(x_btd, (1, 0, 2)).reshape(T * B, Din0).astype(jnp.float32)

    inputs = [x_flat]
    in_specs = [pl.BlockSpec((T * B, Din0), lambda i: (0, 0))]
    for p in layer_params:
        for arr in (p["w_ih"], p["w_hh"], p["bx"], p["bhn"]):
            inputs.append(arr)
            in_specs.append(pl.BlockSpec(arr.shape, lambda i: (0, 0)))

    out_flat = pl.pallas_call(
        _make_gru_kernel(T, B, H, L),
        out_shape=jax.ShapeDtypeStruct((T * B, H), jnp.float32),
        grid=(1,),
        in_specs=in_specs,
        out_specs=pl.BlockSpec((T * B, H), lambda i: (0, 0)),
        scratch_shapes=[pltpu.VMEM((T * B, 3 * H), jnp.float32)],
        compiler_params=pltpu.CompilerParams(
            dimension_semantics=("arbitrary",)),   # single sequential program
    )(*inputs)

    return jnp.transpose(out_flat.reshape(T, B, H), (1, 0, 2))       # (B, T, H)


# --------------------------- parameter creation ---------------------------- #

def make_gru_params(key, input_dim, hidden_dim, num_layers):
    """PyTorch nn.GRU-style init: U(-1/sqrt(H), 1/sqrt(H)); gate order [r,z,n]."""
    num_layers = min(3, num_layers)            # mirrors mod_gru.__init__
    H = hidden_dim
    k = 1.0 / jnp.sqrt(jnp.float32(H))
    layers = []
    for layer in range(num_layers):
        din = input_dim if layer == 0 else H
        key, k1, k2, k3, k4 = jax.random.split(key, 5)
        w_ih = jax.random.uniform(k1, (3 * H, din), jnp.float32, -k, k)
        w_hh = jax.random.uniform(k2, (3 * H, H), jnp.float32, -k, k)
        b_ih = jax.random.uniform(k3, (3 * H,), jnp.float32, -k, k)
        b_hh = jax.random.uniform(k4, (3 * H,), jnp.float32, -k, k)
        bx = jnp.concatenate([
            b_ih[0:H] + b_hh[0:H],            # r: input+hidden biases always add
            b_ih[H:2 * H] + b_hh[H:2 * H],    # z
            b_ih[2 * H:3 * H],                # n: b_in only; b_hn kept separate
        ]).reshape(1, 3 * H)
        layers.append({
            "w_ih": w_ih.T,                   # (din, 3H), columns [r|z|n]
            "w_hh": w_hh.T,                   # (H, 3H)
            "bx": bx,                         # (1, 3H)
            "bhn": b_hh[2 * H:3 * H].reshape(1, H),
        })
    return layers


# ------------------------------ JAX reference ------------------------------ #

def mod_gru_ref(x_btd, layer_params):
    x = jnp.transpose(x_btd, (1, 0, 2)).astype(jnp.float32)   # (T, B, Din)
    H = layer_params[0]["w_hh"].shape[0]
    B = x.shape[1]
    for p in layer_params:
        def step(h, x_t, p=p):
            gx = x_t @ p["w_ih"] + p["bx"]
            gh = h @ p["w_hh"]
            r = jax.nn.sigmoid(gx[:, :H] + gh[:, :H])
            z = jax.nn.sigmoid(gx[:, H:2 * H] + gh[:, H:2 * H])
            n = jnp.tanh(gx[:, 2 * H:] + r * (gh[:, 2 * H:] + p["bhn"]))
            h_new = (1.0 - z) * n + z * h
            return h_new, h_new
        h0 = jnp.zeros((B, H), jnp.float32)
        _, x = jax.lax.scan(step, h0, x)
    return jnp.transpose(x, (1, 0, 2))


# ---------------------------------- main ----------------------------------- #

if __name__ == "__main__":
    B, T, INPUT_DIM, HIDDEN_DIM, NUM_LAYERS = 2, 8, 4, 32, 2

    key = jax.random.PRNGKey(0)
    key, kx, kp = jax.random.split(key, 3)
    x = jax.random.normal(kx, (B, T, INPUT_DIM), jnp.float32)
    layer_params = make_gru_params(kp, INPUT_DIM, HIDDEN_DIM, NUM_LAYERS)

    forward = jax.jit(mod_gru_forward)
    out = jax.block_until_ready(forward(x, layer_params))

    ref = mod_gru_ref(x, layer_params)
    assert out.shape == (B, T, HIDDEN_DIM), out.shape
    assert jnp.allclose(out, ref, atol=2e-5, rtol=2e-5), "mismatch vs JAX reference"

    print("KERNEL_OK")
</pallas_src>

<mosaic_0001>
module attributes {stable_mosaic.version = 11 : i64} {
  func.func @kernel(%arg0: i32, %arg1: memref<16x4xf32, #tpu.memory_space<vmem>>, %arg2: memref<4x96xf32, #tpu.memory_space<vmem>>, %arg3: memref<32x96xf32, #tpu.memory_space<vmem>>, %arg4: memref<1x96xf32, #tpu.memory_space<vmem>>, %arg5: memref<1x32xf32, #tpu.memory_space<vmem>>, %arg6: memref<32x96xf32, #tpu.memory_space<vmem>>, %arg7: memref<32x96xf32, #tpu.memory_space<vmem>>, %arg8: memref<1x96xf32, #tpu.memory_space<vmem>>, %arg9: memref<1x32xf32, #tpu.memory_space<vmem>>, %arg10: memref<16x32xf32, #tpu.memory_space<vmem>>, %arg11: memref<16x96xf32, #tpu.memory_space<vmem>>) attributes {dimension_semantics = [#tpu.dimension_semantics<arbitrary>], iteration_bounds = array<i64: 1>, scalar_prefetch = 0 : i64, scratch_operands = 1 : i64, tpu.core_type = #tpu.core_type<tc>, window_params = [{pipeline_mode = #tpu.pipeline_mode<synchronous>, transform_indices = @transform_0, window_bounds = array<i64: 16, 4>}, {pipeline_mode = #tpu.pipeline_mode<synchronous>, transform_indices = @transform_1, window_bounds = array<i64: 4, 96>}, {pipeline_mode = #tpu.pipeline_mode<synchronous>, transform_indices = @transform_2, window_bounds = array<i64: 32, 96>}, {pipeline_mode = #tpu.pipeline_mode<synchronous>, transform_indices = @transform_3, window_bounds = array<i64: 1, 96>}, {pipeline_mode = #tpu.pipeline_mode<synchronous>, transform_indices = @transform_4, window_bounds = array<i64: 1, 32>}, {pipeline_mode = #tpu.pipeline_mode<synchronous>, transform_indices = @transform_5, window_bounds = array<i64: 32, 96>}, {pipeline_mode = #tpu.pipeline_mode<synchronous>, transform_indices = @transform_6, window_bounds = array<i64: 32, 96>}, {pipeline_mode = #tpu.pipeline_mode<synchronous>, transform_indices = @transform_7, window_bounds = array<i64: 1, 96>}, {pipeline_mode = #tpu.pipeline_mode<synchronous>, transform_indices = @transform_8, window_bounds = array<i64: 1, 32>}, {pipeline_mode = #tpu.pipeline_mode<synchronous>, transform_indices = @transform_9, window_bounds = array<i64: 16, 32>}]} {
    %c0 = arith.constant 0 : index
    %c0_0 = arith.constant 0 : index
    %0 = vector.load %arg2[%c0, %c0_0] : memref<4x96xf32, #tpu.memory_space<vmem>>, vector<4x96xf32>
    %c0_1 = arith.constant 0 : index
    %c0_2 = arith.constant 0 : index
    %1 = vector.load %arg3[%c0_1, %c0_2] : memref<32x96xf32, #tpu.memory_space<vmem>>, vector<32x96xf32>
    %c0_3 = arith.constant 0 : index
    %c0_4 = arith.constant 0 : index
    %2 = vector.load %arg4[%c0_3, %c0_4] : memref<1x96xf32, #tpu.memory_space<vmem>>, vector<1x96xf32>
    %c0_5 = arith.constant 0 : index
    %c0_6 = arith.constant 0 : index
    %3 = vector.load %arg5[%c0_5, %c0_6] : memref<1x32xf32, #tpu.memory_space<vmem>>, vector<1x32xf32>
    %c0_7 = arith.constant 0 : index
    %c0_8 = arith.constant 0 : index
    %4 = vector.load %arg1[%c0_7, %c0_8] : memref<16x4xf32, #tpu.memory_space<vmem>>, vector<16x4xf32>
    %cst = arith.constant dense<0.000000e+00> : vector<16x96xf32>
    %5 = tpu.matmul %4, %0, %cst {dimension_numbers = #tpu.dot_dimension_numbers<[1], [0], [0], [1], [0, 0, 1, 1], [], []>} : vector<16x4xf32>, vector<4x96xf32>, vector<16x96xf32> -> vector<16x96xf32>
    %6 = vector.broadcast %2 : vector<1x96xf32> to vector<16x96xf32>
    %7 = arith.addf %5, %6 : vector<16x96xf32>
    %c0_9 = arith.constant 0 : index
    %c0_10 = arith.constant 0 : index
    %8 = vector.load %arg11[%c0_9, %c0_10] : memref<16x96xf32, #tpu.memory_space<vmem>>, vector<16x96xf32>
    tpu.vector_store %arg11[%c0_9, %c0_10], %7 {strides = array<i32>} : memref<16x96xf32, #tpu.memory_space<vmem>>, vector<16x96xf32>,
    %cst_11 = arith.constant 0.000000e+00 : f32
    %9 = vector.broadcast %cst_11 : f32 to vector<2x32xf32>
    %c0_i32 = arith.constant 0 : i32
    %c2_i32 = arith.constant 2 : i32
    %10 = arith.muli %c0_i32, %c2_i32 : i32
    %11 = arith.index_cast %10 : i32 to index
    %c0_12 = arith.constant 0 : index
    %12 = vector.load %arg11[%11, %c0_12] : memref<16x96xf32, #tpu.memory_space<vmem>>, vector<2x96xf32>
    %cst_13 = arith.constant dense<0.000000e+00> : vector<2x96xf32>
    %13 = tpu.matmul %9, %1, %cst_13 {dimension_numbers = #tpu.dot_dimension_numbers<[1], [0], [0], [1], [0, 0, 1, 1], [], []>} : vector<2x32xf32>, vector<32x96xf32>, vector<2x96xf32> -> vector<2x96xf32>
    %14 = vector.extract_strided_slice %12 {offsets = [0, 0], sizes = [2, 32], strides = [1, 1]} : vector<2x96xf32> to vector<2x32xf32>
    %15 = vector.extract_strided_slice %13 {offsets = [0, 0], sizes = [2, 32], strides = [1, 1]} : vector<2x96xf32> to vector<2x32xf32>
    %16 = arith.addf %14, %15 : vector<2x32xf32>
    %17 = arith.negf %16 : vector<2x32xf32>
    %18 = math.exp %17 : vector<2x32xf32>
    %cst_14 = arith.constant 1.000000e+00 : f32
    %19 = vector.broadcast %cst_14 : f32 to vector<2x32xf32>
    %20 = arith.addf %19, %18 : vector<2x32xf32>
    %21 = arith.divf %19, %20 : vector<2x32xf32>
    %22 = vector.extract_strided_slice %12 {offsets = [0, 32], sizes = [2, 32], strides = [1, 1]} : vector<2x96xf32> to vector<2x32xf32>
    %23 = vector.extract_strided_slice %13 {offsets = [0, 32], sizes = [2, 32], strides = [1, 1]} : vector<2x96xf32> to vector<2x32xf32>
    %24 = arith.addf %22, %23 : vector<2x32xf32>
    %25 = arith.negf %24 : vector<2x32xf32>
    %26 = math.exp %25 : vector<2x32xf32>
    %cst_15 = arith.constant 1.000000e+00 : f32
    %27 = vector.broadcast %cst_15 : f32 to vector<2x32xf32>
    %28 = arith.addf %27, %26 : vector<2x32xf32>
    %29 = arith.divf %27, %28 : vector<2x32xf32>
    %30 = vector.extract_strided_slice %12 {offsets = [0, 64], sizes = [2, 32], strides = [1, 1]} : vector<2x96xf32> to vector<2x32xf32>
    %31 = vector.extract_strided_slice %13 {offsets = [0, 64], sizes = [2, 32], strides = [1, 1]} : vector<2x96xf32> to vector<2x32xf32>
    %32 = vector.broadcast %3 : vector<1x32xf32> to vector<2x32xf32>
    %33 = arith.addf %31, %32 : vector<2x32xf32>
    %34 = arith.mulf %21, %33 : vector<2x32xf32>
    %35 = arith.addf %30, %34 : vector<2x32xf32>
    %36 = math.tanh %35 : vector<2x32xf32>
    %cst_16 = arith.constant 1.000000e+00 : f32
    %37 = vector.broadcast %cst_16 : f32 to vector<2x32xf32>
    %38 = arith.subf %37, %29 : vector<2x32xf32>
    %39 = arith.mulf %38, %36 : vector<2x32xf32>
    %40 = arith.mulf %29, %9 : vector<2x32xf32>
    %41 = arith.addf %39, %40 : vector<2x32xf32>
    %c2_i32_17 = arith.constant 2 : i32
    %42 = arith.muli %c0_i32, %c2_i32_17 : i32
    %43 = arith.index_cast %42 : i32 to index
    %c0_18 = arith.constant 0 : index
    %44 = vector.load %arg10[%43, %c0_18] : memref<16x32xf32, #tpu.memory_space<vmem>>, vector<2x32xf32>
    tpu.vector_store %arg10[%43, %c0_18], %41 {strides = array<i32>} : memref<16x32xf32, #tpu.memory_space<vmem>>, vector<2x32xf32>,
    %c1_i32 = arith.constant 1 : i32
    %c2_i32_19 = arith.constant 2 : i32
    %45 = arith.muli %c1_i32, %c2_i32_19 : i32
    %46 = arith.index_cast %45 : i32 to index
    %c0_20 = arith.constant 0 : index
    %47 = vector.load %arg11[%46, %c0_20] : memref<16x96xf32, #tpu.memory_space<vmem>>, vector<2x96xf32>
    %cst_21 = arith.constant dense<0.000000e+00> : vector<2x96xf32>
    %48 = tpu.matmul %41, %1, %cst_21 {dimension_numbers = #tpu.dot_dimension_numbers<[1], [0], [0], [1], [0, 0, 1, 1], [], []>} : vector<2x32xf32>, vector<32x96xf32>, vector<2x96xf32> -> vector<2x96xf32>
    %49 = vector.extract_strided_slice %47 {offsets = [0, 0], sizes = [2, 32], strides = [1, 1]} : vector<2x96xf32> to vector<2x32xf32>
    %50 = vector.extract_strided_slice %48 {offsets = [0, 0], sizes = [2, 32], strides = [1, 1]} : vector<2x96xf32> to vector<2x32xf32>
    %51 = arith.addf %49, %50 : vector<2x32xf32>
    %52 = arith.negf %51 : vector<2x32xf32>
    %53 = math.exp %52 : vector<2x32xf32>
    %cst_22 = arith.constant 1.000000e+00 : f32
    %54 = vector.broadcast %cst_22 : f32 to vector<2x32xf32>
    %55 = arith.addf %54, %53 : vector<2x32xf32>
    %56 = arith.divf %54, %55 : vector<2x32xf32>
    %57 = vector.extract_strided_slice %47 {offsets = [0, 32], sizes = [2, 32], strides = [1, 1]} : vector<2x96xf32> to vector<2x32xf32>
    %58 = vector.extract_strided_slice %48 {offsets = [0, 32], sizes = [2, 32], strides = [1, 1]} : vector<2x96xf32> to vector<2x32xf32>
    %59 = arith.addf %57, %58 : vector<2x32xf32>
    %60 = arith.negf %59 : vector<2x32xf32>
    %61 = math.exp %60 : vector<2x32xf32>
    %cst_23 = arith.constant 1.000000e+00 : f32
    %62 = vector.broadcast %cst_23 : f32 to vector<2x32xf32>
    %63 = arith.addf %62, %61 : vector<2x32xf32>
    %64 = arith.divf %62, %63 : vector<2x32xf32>
    %65 = vector.extract_strided_slice %47 {offsets = [0, 64], sizes = [2, 32], strides = [1, 1]} : vector<2x96xf32> to vector<2x32xf32>
    %66 = vector.extract_strided_slice %48 {offsets = [0, 64], sizes = [2, 32], strides = [1, 1]} : vector<2x96xf32> to vector<2x32xf32>
    %67 = vector.broadcast %3 : vector<1x32xf32> to vector<2x32xf32>
    %68 = arith.addf %66, %67 : vector<2x32xf32>
    %69 = arith.mulf %56, %68 : vector<2x32xf32>
    %70 = arith.addf %65, %69 : vector<2x32xf32>
    %71 = math.tanh %70 : vector<2x32xf32>
    %cst_24 = arith.constant 1.000000e+00 : f32
    %72 = vector.broadcast %cst_24 : f32 to vector<2x32xf32>
    %73 = arith.subf %72, %64 : vector<2x32xf32>
    %74 = arith.mulf %73, %71 : vector<2x32xf32>
    %75 = arith.mulf %64, %41 : vector<2x32xf32>
    %76 = arith.addf %74, %75 : vector<2x32xf32>
    %c2_i32_25 = arith.constant 2 : i32
    %77 = arith.muli %c1_i32, %c2_i32_25 : i32
    %78 = arith.index_cast %77 : i32 to index
    %c0_26 = arith.constant 0 : index
    %79 = vector.load %arg10[%78, %c0_26] : memref<16x32xf32, #tpu.memory_space<vmem>>, vector<2x32xf32>
    tpu.vector_store %arg10[%78, %c0_26], %76 {strides = array<i32>} : memref<16x32xf32, #tpu.memory_space<vmem>>, vector<2x32xf32>,
    %c2_i32_27 = arith.constant 2 : i32
    %c2_i32_28 = arith.constant 2 : i32
    %80 = arith.muli %c2_i32_27, %c2_i32_28 : i32
    %81 = arith.index_cast %80 : i32 to index
    %c0_29 = arith.constant 0 : index
    %82 = vector.load %arg11[%81, %c0_29] : memref<16x96xf32, #tpu.memory_space<vmem>>, vector<2x96xf32>
    %cst_30 = arith.constant dense<0.000000e+00> : vector<2x96xf32>
    %83 = tpu.matmul %76, %1, %cst_30 {dimension_numbers = #tpu.dot_dimension_numbers<[1], [0], [0], [1], [0, 0, 1, 1], [], []>} : vector<2x32xf32>, vector<32x96xf32>, vector<2x96xf32> -> vector<2x96xf32>
    %84 = vector.extract_strided_slice %82 {offsets = [0, 0], sizes = [2, 32], strides = [1, 1]} : vector<2x96xf32> to vector<2x32xf32>
    %85 = vector.extract_strided_slice %83 {offsets = [0, 0], sizes = [2, 32], strides = [1, 1]} : vector<2x96xf32> to vector<2x32xf32>
    %86 = arith.addf %84, %85 : vector<2x32xf32>
    %87 = arith.negf %86 : vector<2x32xf32>
    %88 = math.exp %87 : vector<2x32xf32>
    %cst_31 = arith.constant 1.000000e+00 : f32
    %89 = vector.broadcast %cst_31 : f32 to vector<2x32xf32>
    %90 = arith.addf %89, %88 : vector<2x32xf32>
    %91 = arith.divf %89, %90 : vector<2x32xf32>
    %92 = vector.extract_strided_slice %82 {offsets = [0, 32], sizes = [2, 32], strides = [1, 1]} : vector<2x96xf32> to vector<2x32xf32>
    %93 = vector.extract_strided_slice %83 {offsets = [0, 32], sizes = [2, 32], strides = [1, 1]} : vector<2x96xf32> to vector<2x32xf32>
    %94 = arith.addf %92, %93 : vector<2x32xf32>
    %95 = arith.negf %94 : vector<2x32xf32>
    %96 = math.exp %95 : vector<2x32xf32>
    %cst_32 = arith.constant 1.000000e+00 : f32
    %97 = vector.broadcast %cst_32 : f32 to vector<2x32xf32>
    %98 = arith.addf %97, %96 : vector<2x32xf32>
    %99 = arith.divf %97, %98 : vector<2x32xf32>
    %100 = vector.extract_strided_slice %82 {offsets = [0, 64], sizes = [2, 32], strides = [1, 1]} : vector<2x96xf32> to vector<2x32xf32>
    %101 = vector.extract_strided_slice %83 {offsets = [0, 64], sizes = [2, 32], strides = [1, 1]} : vector<2x96xf32> to vector<2x32xf32>
    %102 = vector.broadcast %3 : vector<1x32xf32> to vector<2x32xf32>
    %103 = arith.addf %101, %102 : vector<2x32xf32>
    %104 = arith.mulf %91, %103 : vector<2x32xf32>
    %105 = arith.addf %100, %104 : vector<2x32xf32>
    %106 = math.tanh %105 : vector<2x32xf32>
    %cst_33 = arith.constant 1.000000e+00 : f32
    %107 = vector.broadcast %cst_33 : f32 to vector<2x32xf32>
    %108 = arith.subf %107, %99 : vector<2x32xf32>
    %109 = arith.mulf %108, %106 : vector<2x32xf32>
    %110 = arith.mulf %99, %76 : vector<2x32xf32>
    %111 = arith.addf %109, %110 : vector<2x32xf32>
    %c2_i32_34 = arith.constant 2 : i32
    %112 = arith.muli %c2_i32_27, %c2_i32_34 : i32
    %113 = arith.index_cast %112 : i32 to index
    %c0_35 = arith.constant 0 : index
    %114 = vector.load %arg10[%113, %c0_35] : memref<16x32xf32, #tpu.memory_space<vmem>>, vector<2x32xf32>
    tpu.vector_store %arg10[%113, %c0_35], %111 {strides = array<i32>} : memref<16x32xf32, #tpu.memory_space<vmem>>, vector<2x32xf32>,
    %c3_i32 = arith.constant 3 : i32
    %c2_i32_36 = arith.constant 2 : i32
    %115 = arith.muli %c3_i32, %c2_i32_36 : i32
    %116 = arith.index_cast %115 : i32 to index
    %c0_37 = arith.constant 0 : index
    %117 = vector.load %arg11[%116, %c0_37] : memref<16x96xf32, #tpu.memory_space<vmem>>, vector<2x96xf32>
    %cst_38 = arith.constant dense<0.000000e+00> : vector<2x96xf32>
    %118 = tpu.matmul %111, %1, %cst_38 {dimension_numbers = #tpu.dot_dimension_numbers<[1], [0], [0], [1], [0, 0, 1, 1], [], []>} : vector<2x32xf32>, vector<32x96xf32>, vector<2x96xf32> -> vector<2x96xf32>
    %119 = vector.extract_strided_slice %117 {offsets = [0, 0], sizes = [2, 32], strides = [1, 1]} : vector<2x96xf32> to vector<2x32xf32>
    %120 = vector.extract_strided_slice %118 {offsets = [0, 0], sizes = [2, 32], strides = [1, 1]} : vector<2x96xf32> to vector<2x32xf32>
    %121 = arith.addf %119, %120 : vector<2x32xf32>
    %122 = arith.negf %121 : vector<2x32xf32>
    %123 = math.exp %122 : vector<2x32xf32>
    %cst_39 = arith.constant 1.000000e+00 : f32
    %124 = vector.broadcast %cst_39 : f32 to vector<2x32xf32>
    %125 = arith.addf %124, %123 : vector<2x32xf32>
    %126 = arith.divf %124, %125 : vector<2x32xf32>
    %127 = vector.extract_strided_slice %117 {offsets = [0, 32], sizes = [2, 32], strides = [1, 1]} : vector<2x96xf32> to vector<2x32xf32>
    %128 = vector.extract_strided_slice %118 {offsets = [0, 32], sizes = [2, 32], strides = [1, 1]} : vector<2x96xf32> to vector<2x32xf32>
    %129 = arith.addf %127, %128 : vector<2x32xf32>
    %130 = arith.negf %129 : vector<2x32xf32>
    %131 = math.exp %130 : vector<2x32xf32>
    %cst_40 = arith.constant 1.000000e+00 : f32
    %132 = vector.broadcast %cst_40 : f32 to vector<2x32xf32>
    %133 = arith.addf %132, %131 : vector<2x32xf32>
    %134 = arith.divf %132, %133 : vector<2x32xf32>
    %135 = vector.extract_strided_slice %117 {offsets = [0, 64], sizes = [2, 32], strides = [1, 1]} : vector<2x96xf32> to vector<2x32xf32>
    %136 = vector.extract_strided_slice %118 {offsets = [0, 64], sizes = [2, 32], strides = [1, 1]} : vector<2x96xf32> to vector<2x32xf32>
    %137 = vector.broadcast %3 : vector<1x32xf32> to vector<2x32xf32>
    %138 = arith.addf %136, %137 : vector<2x32xf32>
    %139 = arith.mulf %126, %138 : vector<2x32xf32>
    %140 = arith.addf %135, %139 : vector<2x32xf32>
    %141 = math.tanh %140 : vector<2x32xf32>
    %cst_41 = arith.constant 1.000000e+00 : f32
    %142 = vector.broadcast %cst_41 : f32 to vector<2x32xf32>
    %143 = arith.subf %142, %134 : vector<2x32xf32>
    %144 = arith.mulf %143, %141 : vector<2x32xf32>
    %145 = arith.mulf %134, %111 : vector<2x32xf32>
    %146 = arith.addf %144, %145 : vector<2x32xf32>
    %c2_i32_42 = arith.constant 2 : i32
    %147 = arith.muli %c3_i32, %c2_i32_42 : i32
    %148 = arith.index_cast %147 : i32 to index
    %c0_43 = arith.constant 0 : index
    %149 = vector.load %arg10[%148, %c0_43] : memref<16x32xf32, #tpu.memory_space<vmem>>, vector<2x32xf32>
    tpu.vector_store %arg10[%148, %c0_43], %146 {strides = array<i32>} : memref<16x32xf32, #tpu.memory_space<vmem>>, vector<2x32xf32>,
    %c4_i32 = arith.constant 4 : i32
    %c2_i32_44 = arith.constant 2 : i32
    %150 = arith.muli %c4_i32, %c2_i32_44 : i32
    %151 = arith.index_cast %150 : i32 to index
    %c0_45 = arith.constant 0 : index
    %152 = vector.load %arg11[%151, %c0_45] : memref<16x96xf32, #tpu.memory_space<vmem>>, vector<2x96xf32>
    %cst_46 = arith.constant dense<0.000000e+00> : vector<2x96xf32>
    %153 = tpu.matmul %146, %1, %cst_46 {dimension_numbers = #tpu.dot_dimension_numbers<[1], [0], [0], [1], [0, 0, 1, 1], [], []>} : vector<2x32xf32>, vector<32x96xf32>, vector<2x96xf32> -> vector<2x96xf32>
    %154 = vector.extract_strided_slice %152 {offsets = [0, 0], sizes = [2, 32], strides = [1, 1]} : vector<2x96xf32> to vector<2x32xf32>
    %155 = vector.extract_strided_slice %153 {offsets = [0, 0], sizes = [2, 32], strides = [1, 1]} : vector<2x96xf32> to vector<2x32xf32>
    %156 = arith.addf %154, %155 : vector<2x32xf32>
    %157 = arith.negf %156 : vector<2x32xf32>
    %158 = math.exp %157 : vector<2x32xf32>
    %cst_47 = arith.constant 1.000000e+00 : f32
    %159 = vector.broadcast %cst_47 : f32 to vector<2x32xf32>
    %160 = arith.addf %159, %158 : vector<2x32xf32>
    %161 = arith.divf %159, %160 : vector<2x32xf32>
    %162 = vector.extract_strided_slice %152 {offsets = [0, 32], sizes = [2, 32], strides = [1, 1]} : vector<2x96xf32> to vector<2x32xf32>
    %163 = vector.extract_strided_slice %153 {offsets = [0, 32], sizes = [2, 32], strides = [1, 1]} : vector<2x96xf32> to vector<2x32xf32>
    %164 = arith.addf %162, %163 : vector<2x32xf32>
    %165 = arith.negf %164 : vector<2x32xf32>
    %166 = math.exp %165 : vector<2x32xf32>
    %cst_48 = arith.constant 1.000000e+00 : f32
    %167 = vector.broadcast %cst_48 : f32 to vector<2x32xf32>
    %168 = arith.addf %167, %166 : vector<2x32xf32>
    %169 = arith.divf %167, %168 : vector<2x32xf32>
    %170 = vector.extract_strided_slice %152 {offsets = [0, 64], sizes = [2, 32], strides = [1, 1]} : vector<2x96xf32> to vector<2x32xf32>
    %171 = vector.extract_strided_slice %153 {offsets = [0, 64], sizes = [2, 32], strides = [1, 1]} : vector<2x96xf32> to vector<2x32xf32>
    %172 = vector.broadcast %3 : vector<1x32xf32> to vector<2x32xf32>
    %173 = arith.addf %171, %172 : vector<2x32xf32>
    %174 = arith.mulf %161, %173 : vector<2x32xf32>
    %175 = arith.addf %170, %174 : vector<2x32xf32>
    %176 = math.tanh %175 : vector<2x32xf32>
    %cst_49 = arith.constant 1.000000e+00 : f32
    %177 = vector.broadcast %cst_49 : f32 to vector<2x32xf32>
    %178 = arith.subf %177, %169 : vector<2x32xf32>
    %179 = arith.mulf %178, %176 : vector<2x32xf32>
    %180 = arith.mulf %169, %146 : vector<2x32xf32>
    %181 = arith.addf %179, %180 : vector<2x32xf32>
    %c2_i32_50 = arith.constant 2 : i32
    %182 = arith.muli %c4_i32, %c2_i32_50 : i32
    %183 = arith.index_cast %182 : i32 to index
    %c0_51 = arith.constant 0 : index
    %184 = vector.load %arg10[%183, %c0_51] : memref<16x32xf32, #tpu.memory_space<vmem>>, vector<2x32xf32>
    tpu.vector_store %arg10[%183, %c0_51], %181 {strides = array<i32>} : memref<16x32xf32, #tpu.memory_space<vmem>>, vector<2x32xf32>,
    %c5_i32 = arith.constant 5 : i32
    %c2_i32_52 = arith.constant 2 : i32
    %185 = arith.muli %c5_i32, %c2_i32_52 : i32
    %186 = arith.index_cast %185 : i32 to index
    %c0_53 = arith.constant 0 : index
    %187 = vector.load %arg11[%186, %c0_53] : memref<16x96xf32, #tpu.memory_space<vmem>>, vector<2x96xf32>
    %cst_54 = arith.constant dense<0.000000e+00> : vector<2x96xf32>
    %188 = tpu.matmul %181, %1, %cst_54 {dimension_numbers = #tpu.dot_dimension_numbers<[1], [0], [0], [1], [0, 0, 1, 1], [], []>} : vector<2x32xf32>, vector<32x96xf32>, vector<2x96xf32> -> vector<2x96xf32>
    %189 = vector.extract_strided_slice %187 {offsets = [0, 0], sizes = [2, 32], strides = [1, 1]} : vector<2x96xf32> to vector<2x32xf32>
    %190 = vector.extract_strided_slice %188 {offsets = [0, 0], sizes = [2, 32], strides = [1, 1]} : vector<2x96xf32> to vector<2x32xf32>
    %191 = arith.addf %189, %190 : vector<2x32xf32>
    %192 = arith.negf %191 : vector<2x32xf32>
    %193 = math.exp %192 : vector<2x32xf32>
    %cst_55 = arith.constant 1.000000e+00 : f32
    %194 = vector.broadcast %cst_55 : f32 to vector<2x32xf32>
    %195 = arith.addf %194, %193 : vector<2x32xf32>
    %196 = arith.divf %194, %195 : vector<2x32xf32>
    %197 = vector.extract_strided_slice %187 {offsets = [0, 32], sizes = [2, 32], strides = [1, 1]} : vector<2x96xf32> to vector<2x32xf32>
    %198 = vector.extract_strided_slice %188 {offsets = [0, 32], sizes = [2, 32], strides = [1, 1]} : vector<2x96xf32> to vector<2x32xf32>
    %199 = arith.addf %197, %198 : vector<2x32xf32>
    %200 = arith.negf %199 : vector<2x32xf32>
    %201 = math.exp %200 : vector<2x32xf32>
    %cst_56 = arith.constant 1.000000e+00 : f32
    %202 = vector.broadcast %cst_56 : f32 to vector<2x32xf32>
    %203 = arith.addf %202, %201 : vector<2x32xf32>
    %204 = arith.divf %202, %203 : vector<2x32xf32>
    %205 = vector.extract_strided_slice %187 {offsets = [0, 64], sizes = [2, 32], strides = [1, 1]} : vector<2x96xf32> to vector<2x32xf32>
    %206 = vector.extract_strided_slice %188 {offsets = [0, 64], sizes = [2, 32], strides = [1, 1]} : vector<2x96xf32> to vector<2x32xf32>
    %207 = vector.broadcast %3 : vector<1x32xf32> to vector<2x32xf32>
    %208 = arith.addf %206, %207 : vector<2x32xf32>
    %209 = arith.mulf %196, %208 : vector<2x32xf32>
    %210 = arith.addf %205, %209 : vector<2x32xf32>
    %211 = math.tanh %210 : vector<2x32xf32>
    %cst_57 = arith.constant 1.000000e+00 : f32
    %212 = vector.broadcast %cst_57 : f32 to vector<2x32xf32>
    %213 = arith.subf %212, %204 : vector<2x32xf32>
    %214 = arith.mulf %213, %211 : vector<2x32xf32>
    %215 = arith.mulf %204, %181 : vector<2x32xf32>
    %216 = arith.addf %214, %215 : vector<2x32xf32>
    %c2_i32_58 = arith.constant 2 : i32
    %217 = arith.muli %c5_i32, %c2_i32_58 : i32
    %218 = arith.index_cast %217 : i32 to index
    %c0_59 = arith.constant 0 : index
    %219 = vector.load %arg10[%218, %c0_59] : memref<16x32xf32, #tpu.memory_space<vmem>>, vector<2x32xf32>
    tpu.vector_store %arg10[%218, %c0_59], %216 {strides = array<i32>} : memref<16x32xf32, #tpu.memory_space<vmem>>, vector<2x32xf32>,
    %c6_i32 = arith.constant 6 : i32
    %c2_i32_60 = arith.constant 2 : i32
    %220 = arith.muli %c6_i32, %c2_i32_60 : i32
    %221 = arith.index_cast %220 : i32 to index
    %c0_61 = arith.constant 0 : index
    %222 = vector.load %arg11[%221, %c0_61] : memref<16x96xf32, #tpu.memory_space<vmem>>, vector<2x96xf32>
    %cst_62 = arith.constant dense<0.000000e+00> : vector<2x96xf32>
    %223 = tpu.matmul %216, %1, %cst_62 {dimension_numbers = #tpu.dot_dimension_numbers<[1], [0], [0], [1], [0, 0, 1, 1], [], []>} : vector<2x32xf32>, vector<32x96xf32>, vector<2x96xf32> -> vector<2x96xf32>
    %224 = vector.extract_strided_slice %222 {offsets = [0, 0], sizes = [2, 32], strides = [1, 1]} : vector<2x96xf32> to vector<2x32xf32>
    %225 = vector.extract_strided_slice %223 {offsets = [0, 0], sizes = [2, 32], strides = [1, 1]} : vector<2x96xf32> to vector<2x32xf32>
    %226 = arith.addf %224, %225 : vector<2x32xf32>
    %227 = arith.negf %226 : vector<2x32xf32>
    %228 = math.exp %227 : vector<2x32xf32>
    %cst_63 = arith.constant 1.000000e+00 : f32
    %229 = vector.broadcast %cst_63 : f32 to vector<2x32xf32>
    %230 = arith.addf %229, %228 : vector<2x32xf32>
    %231 = arith.divf %229, %230 : vector<2x32xf32>
    %232 = vector.extract_strided_slice %222 {offsets = [0, 32], sizes = [2, 32], strides = [1, 1]} : vector<2x96xf32> to vector<2x32xf32>
    %233 = vector.extract_strided_slice %223 {offsets = [0, 32], sizes = [2, 32], strides = [1, 1]} : vector<2x96xf32> to vector<2x32xf32>
    %234 = arith.addf %232, %233 : vector<2x32xf32>
    %235 = arith.negf %234 : vector<2x32xf32>
    %236 = math.exp %235 : vector<2x32xf32>
    %cst_64 = arith.constant 1.000000e+00 : f32
    %237 = vector.broadcast %cst_64 : f32 to vector<2x32xf32>
    %238 = arith.addf %237, %236 : vector<2x32xf32>
    %239 = arith.divf %237, %238 : vector<2x32xf32>
    %240 = vector.extract_strided_slice %222 {offsets = [0, 64], sizes = [2, 32], strides = [1, 1]} : vector<2x96xf32> to vector<2x32xf32>
    %241 = vector.extract_strided_slice %223 {offsets = [0, 64], sizes = [2, 32], strides = [1, 1]} : vector<2x96xf32> to vector<2x32xf32>
    %242 = vector.broadcast %3 : vector<1x32xf32> to vector<2x32xf32>
    %243 = arith.addf %241, %242 : vector<2x32xf32>
    %244 = arith.mulf %231, %243 : vector<2x32xf32>
    %245 = arith.addf %240, %244 : vector<2x32xf32>
    %246 = math.tanh %245 : vector<2x32xf32>
    %cst_65 = arith.constant 1.000000e+00 : f32
    %247 = vector.broadcast %cst_65 : f32 to vector<2x32xf32>
    %248 = arith.subf %247, %239 : vector<2x32xf32>
    %249 = arith.mulf %248, %246 : vector<2x32xf32>
    %250 = arith.mulf %239, %216 : vector<2x32xf32>
    %251 = arith.addf %249, %250 : vector<2x32xf32>
    %c2_i32_66 = arith.constant 2 : i32
    %252 = arith.muli %c6_i32, %c2_i32_66 : i32
    %253 = arith.index_cast %252 : i32 to index
    %c0_67 = arith.constant 0 : index
    %254 = vector.load %arg10[%253, %c0_67] : memref<16x32xf32, #tpu.memory_space<vmem>>, vector<2x32xf32>
    tpu.vector_store %arg10[%253, %c0_67], %251 {strides = array<i32>} : memref<16x32xf32, #tpu.memory_space<vmem>>, vector<2x32xf32>,
    %c7_i32 = arith.constant 7 : i32
    %c2_i32_68 = arith.constant 2 : i32
    %255 = arith.muli %c7_i32, %c2_i32_68 : i32
    %256 = arith.index_cast %255 : i32 to index
    %c0_69 = arith.constant 0 : index
    %257 = vector.load %arg11[%256, %c0_69] : memref<16x96xf32, #tpu.memory_space<vmem>>, vector<2x96xf32>
    %cst_70 = arith.constant dense<0.000000e+00> : vector<2x96xf32>
    %258 = tpu.matmul %251, %1, %cst_70 {dimension_numbers = #tpu.dot_dimension_numbers<[1], [0], [0], [1], [0, 0, 1, 1], [], []>} : vector<2x32xf32>, vector<32x96xf32>, vector<2x96xf32> -> vector<2x96xf32>
    %259 = vector.extract_strided_slice %257 {offsets = [0, 0], sizes = [2, 32], strides = [1, 1]} : vector<2x96xf32> to vector<2x32xf32>
    %260 = vector.extract_strided_slice %258 {offsets = [0, 0], sizes = [2, 32], strides = [1, 1]} : vector<2x96xf32> to vector<2x32xf32>
    %261 = arith.addf %259, %260 : vector<2x32xf32>
    %262 = arith.negf %261 : vector<2x32xf32>
    %263 = math.exp %262 : vector<2x32xf32>
    %cst_71 = arith.constant 1.000000e+00 : f32
    %264 = vector.broadcast %cst_71 : f32 to vector<2x32xf32>
    %265 = arith.addf %264, %263 : vector<2x32xf32>
    %266 = arith.divf %264, %265 : vector<2x32xf32>
    %267 = vector.extract_strided_slice %257 {offsets = [0, 32], sizes = [2, 32], strides = [1, 1]} : vector<2x96xf32> to vector<2x32xf32>
    %268 = vector.extract_strided_slice %258 {offsets = [0, 32], sizes = [2, 32], strides = [1, 1]} : vector<2x96xf32> to vector<2x32xf32>
    %269 = arith.addf %267, %268 : vector<2x32xf32>
    %270 = arith.negf %269 : vector<2x32xf32>
    %271 = math.exp %270 : vector<2x32xf32>
    %cst_72 = arith.constant 1.000000e+00 : f32
    %272 = vector.broadcast %cst_72 : f32 to vector<2x32xf32>
    %273 = arith.addf %272, %271 : vector<2x32xf32>
    %274 = arith.divf %272, %273 : vector<2x32xf32>
    %275 = vector.extract_strided_slice %257 {offsets = [0, 64], sizes = [2, 32], strides = [1, 1]} : vector<2x96xf32> to vector<2x32xf32>
    %276 = vector.extract_strided_slice %258 {offsets = [0, 64], sizes = [2, 32], strides = [1, 1]} : vector<2x96xf32> to vector<2x32xf32>
    %277 = vector.broadcast %3 : vector<1x32xf32> to vector<2x32xf32>
    %278 = arith.addf %276, %277 : vector<2x32xf32>
    %279 = arith.mulf %266, %278 : vector<2x32xf32>
    %280 = arith.addf %275, %279 : vector<2x32xf32>
    %281 = math.tanh %280 : vector<2x32xf32>
    %cst_73 = arith.constant 1.000000e+00 : f32
    %282 = vector.broadcast %cst_73 : f32 to vector<2x32xf32>
    %283 = arith.subf %282, %274 : vector<2x32xf32>
    %284 = arith.mulf %283, %281 : vector<2x32xf32>
    %285 = arith.mulf %274, %251 : vector<2x32xf32>
    %286 = arith.addf %284, %285 : vector<2x32xf32>
    %c2_i32_74 = arith.constant 2 : i32
    %287 = arith.muli %c7_i32, %c2_i32_74 : i32
    %288 = arith.index_cast %287 : i32 to index
    %c0_75 = arith.constant 0 : index
    %289 = vector.load %arg10[%288, %c0_75] : memref<16x32xf32, #tpu.memory_space<vmem>>, vector<2x32xf32>
    tpu.vector_store %arg10[%288, %c0_75], %286 {strides = array<i32>} : memref<16x32xf32, #tpu.memory_space<vmem>>, vector<2x32xf32>,
    %c8_i32 = arith.constant 8 : i32
    %c0_76 = arith.constant 0 : index
    %c0_77 = arith.constant 0 : index
    %290 = vector.load %arg6[%c0_76, %c0_77] : memref<32x96xf32, #tpu.memory_space<vmem>>, vector<32x96xf32>
    %c0_78 = arith.constant 0 : index
    %c0_79 = arith.constant 0 : index
    %291 = vector.load %arg7[%c0_78, %c0_79] : memref<32x96xf32, #tpu.memory_space<vmem>>, vector<32x96xf32>
    %c0_80 = arith.constant 0 : index
    %c0_81 = arith.constant 0 : index
    %292 = vector.load %arg8[%c0_80, %c0_81] : memref<1x96xf32, #tpu.memory_space<vmem>>, vector<1x96xf32>
    %c0_82 = arith.constant 0 : index
    %c0_83 = arith.constant 0 : index
    %293 = vector.load %arg9[%c0_82, %c0_83] : memref<1x32xf32, #tpu.memory_space<vmem>>, vector<1x32xf32>
    %c0_84 = arith.constant 0 : index
    %c0_85 = arith.constant 0 : index
    %294 = vector.load %arg10[%c0_84, %c0_85] : memref<16x32xf32, #tpu.memory_space<vmem>>, vector<16x32xf32>
    %cst_86 = arith.constant dense<0.000000e+00> : vector<16x96xf32>
    %295 = tpu.matmul %294, %290, %cst_86 {dimension_numbers = #tpu.dot_dimension_numbers<[1], [0], [0], [1], [0, 0, 1, 1], [], []>} : vector<16x32xf32>, vector<32x96xf32>, vector<16x96xf32> -> vector<16x96xf32>
    %296 = vector.broadcast %292 : vector<1x96xf32> to vector<16x96xf32>
    %297 = arith.addf %295, %296 : vector<16x96xf32>
    %c0_87 = arith.constant 0 : index
    %c0_88 = arith.constant 0 : index
    %298 = vector.load %arg11[%c0_87, %c0_88] : memref<16x96xf32, #tpu.memory_space<vmem>>, vector<16x96xf32>
    tpu.vector_store %arg11[%c0_87, %c0_88], %297 {strides = array<i32>} : memref<16x96xf32, #tpu.memory_space<vmem>>, vector<16x96xf32>,
    %cst_89 = arith.constant 0.000000e+00 : f32
    %299 = vector.broadcast %cst_89 : f32 to vector<2x32xf32>
    %c0_i32_90 = arith.constant 0 : i32
    %c2_i32_91 = arith.constant 2 : i32
    %300 = arith.muli %c0_i32_90, %c2_i32_91 : i32
    %301 = arith.index_cast %300 : i32 to index
    %c0_92 = arith.constant 0 : index
    %302 = vector.load %arg11[%301, %c0_92] : memref<16x96xf32, #tpu.memory_space<vmem>>, vector<2x96xf32>
    %cst_93 = arith.constant dense<0.000000e+00> : vector<2x96xf32>
    %303 = tpu.matmul %299, %291, %cst_93 {dimension_numbers = #tpu.dot_dimension_numbers<[1], [0], [0], [1], [0, 0, 1, 1], [], []>} : vector<2x32xf32>, vector<32x96xf32>, vector<2x96xf32> -> vector<2x96xf32>
    %304 = vector.extract_strided_slice %302 {offsets = [0, 0], sizes = [2, 32], strides = [1, 1]} : vector<2x96xf32> to vector<2x32xf32>
    %305 = vector.extract_strided_slice %303 {offsets = [0, 0], sizes = [2, 32], strides = [1, 1]} : vector<2x96xf32> to vector<2x32xf32>
    %306 = arith.addf %304, %305 : vector<2x32xf32>
    %307 = arith.negf %306 : vector<2x32xf32>
    %308 = math.exp %307 : vector<2x32xf32>
    %cst_94 = arith.constant 1.000000e+00 : f32
    %309 = vector.broadcast %cst_94 : f32 to vector<2x32xf32>
    %310 = arith.addf %309, %308 : vector<2x32xf32>
    %311 = arith.divf %309, %310 : vector<2x32xf32>
    %312 = vector.extract_strided_slice %302 {offsets = [0, 32], sizes = [2, 32], strides = [1, 1]} : vector<2x96xf32> to vector<2x32xf32>
    %313 = vector.extract_strided_slice %303 {offsets = [0, 32], sizes = [2, 32], strides = [1, 1]} : vector<2x96xf32> to vector<2x32xf32>
    %314 = arith.addf %312, %313 : vector<2x32xf32>
    %315 = arith.negf %314 : vector<2x32xf32>
    %316 = math.exp %315 : vector<2x32xf32>
    %cst_95 = arith.constant 1.000000e+00 : f32
    %317 = vector.broadcast %cst_95 : f32 to vector<2x32xf32>
    %318 = arith.addf %317, %316 : vector<2x32xf32>
    %319 = arith.divf %317, %318 : vector<2x32xf32>
    %320 = vector.extract_strided_slice %302 {offsets = [0, 64], sizes = [2, 32], strides = [1, 1]} : vector<2x96xf32> to vector<2x32xf32>
    %321 = vector.extract_strided_slice %303 {offsets = [0, 64], sizes = [2, 32], strides = [1, 1]} : vector<2x96xf32> to vector<2x32xf32>
    %322 = vector.broadcast %293 : vector<1x32xf32> to vector<2x32xf32>
    %323 = arith.addf %321, %322 : vector<2x32xf32>
    %324 = arith.mulf %311, %323 : vector<2x32xf32>
    %325 = arith.addf %320, %324 : vector<2x32xf32>
    %326 = math.tanh %325 : vector<2x32xf32>
    %cst_96 = arith.constant 1.000000e+00 : f32
    %327 = vector.broadcast %cst_96 : f32 to vector<2x32xf32>
    %328 = arith.subf %327, %319 : vector<2x32xf32>
    %329 = arith.mulf %328, %326 : vector<2x32xf32>
    %330 = arith.mulf %319, %299 : vector<2x32xf32>
    %331 = arith.addf %329, %330 : vector<2x32xf32>
    %c2_i32_97 = arith.constant 2 : i32
    %332 = arith.muli %c0_i32_90, %c2_i32_97 : i32
    %333 = arith.index_cast %332 : i32 to index
    %c0_98 = arith.constant 0 : index
    %334 = vector.load %arg10[%333, %c0_98] : memref<16x32xf32, #tpu.memory_space<vmem>>, vector<2x32xf32>
    tpu.vector_store %arg10[%333, %c0_98], %331 {strides = array<i32>} : memref<16x32xf32, #tpu.memory_space<vmem>>, vector<2x32xf32>,
    %c1_i32_99 = arith.constant 1 : i32
    %c2_i32_100 = arith.constant 2 : i32
    %335 = arith.muli %c1_i32_99, %c2_i32_100 : i32
    %336 = arith.index_cast %335 : i32 to index
    %c0_101 = arith.constant 0 : index
    %337 = vector.load %arg11[%336, %c0_101] : memref<16x96xf32, #tpu.memory_space<vmem>>, vector<2x96xf32>
    %cst_102 = arith.constant dense<0.000000e+00> : vector<2x96xf32>
    %338 = tpu.matmul %331, %291, %cst_102 {dimension_numbers = #tpu.dot_dimension_numbers<[1], [0], [0], [1], [0, 0, 1, 1], [], []>} : vector<2x32xf32>, vector<32x96xf32>, vector<2x96xf32> -> vector<2x96xf32>
    %339 = vector.extract_strided_slice %337 {offsets = [0, 0], sizes = [2, 32], strides = [1, 1]} : vector<2x96xf32> to vector<2x32xf32>
    %340 = vector.extract_strided_slice %338 {offsets = [0, 0], sizes = [2, 32], strides = [1, 1]} : vector<2x96xf32> to vector<2x32xf32>
    %341 = arith.addf %339, %340 : vector<2x32xf32>
    %342 = arith.negf %341 : vector<2x32xf32>
    %343 = math.exp %342 : vector<2x32xf32>
    %cst_103 = arith.constant 1.000000e+00 : f32
    %344 = vector.broadcast %cst_103 : f32 to vector<2x32xf32>
    %345 = arith.addf %344, %343 : vector<2x32xf32>
    %346 = arith.divf %344, %345 : vector<2x32xf32>
    %347 = vector.extract_strided_slice %337 {offsets = [0, 32], sizes = [2, 32], strides = [1, 1]} : vector<2x96xf32> to vector<2x32xf32>
    %348 = vector.extract_strided_slice %338 {offsets = [0, 32], sizes = [2, 32], strides = [1, 1]} : vector<2x96xf32> to vector<2x32xf32>
    %349 = arith.addf %347, %348 : vector<2x32xf32>
    %350 = arith.negf %349 : vector<2x32xf32>
    %351 = math.exp %350 : vector<2x32xf32>
    %cst_104 = arith.constant 1.000000e+00 : f32
    %352 = vector.broadcast %cst_104 : f32 to vector<2x32xf32>
    %353 = arith.addf %352, %351 : vector<2x32xf32>
    %354 = arith.divf %352, %353 : vector<2x32xf32>
    %355 = vector.extract_strided_slice %337 {offsets = [0, 64], sizes = [2, 32], strides = [1, 1]} : vector<2x96xf32> to vector<2x32xf32>
    %356 = vector.extract_strided_slice %338 {offsets = [0, 64], sizes = [2, 32], strides = [1, 1]} : vector<2x96xf32> to vector<2x32xf32>
    %357 = vector.broadcast %293 : vector<1x32xf32> to vector<2x32xf32>
    %358 = arith.addf %356, %357 : vector<2x32xf32>
    %359 = arith.mulf %346, %358 : vector<2x32xf32>
    %360 = arith.addf %355, %359 : vector<2x32xf32>
    %361 = math.tanh %360 : vector<2x32xf32>
    %cst_105 = arith.constant 1.000000e+00 : f32
    %362 = vector.broadcast %cst_105 : f32 to vector<2x32xf32>
    %363 = arith.subf %362, %354 : vector<2x32xf32>
    %364 = arith.mulf %363, %361 : vector<2x32xf32>
    %365 = arith.mulf %354, %331 : vector<2x32xf32>
    %366 = arith.addf %364, %365 : vector<2x32xf32>
    %c2_i32_106 = arith.constant 2 : i32
    %367 = arith.muli %c1_i32_99, %c2_i32_106 : i32
    %368 = arith.index_cast %367 : i32 to index
    %c0_107 = arith.constant 0 : index
    %369 = vector.load %arg10[%368, %c0_107] : memref<16x32xf32, #tpu.memory_space<vmem>>, vector<2x32xf32>
    tpu.vector_store %arg10[%368, %c0_107], %366 {strides = array<i32>} : memref<16x32xf32, #tpu.memory_space<vmem>>, vector<2x32xf32>,
    %c2_i32_108 = arith.constant 2 : i32
    %c2_i32_109 = arith.constant 2 : i32
    %370 = arith.muli %c2_i32_108, %c2_i32_109 : i32
    %371 = arith.index_cast %370 : i32 to index
    %c0_110 = arith.constant 0 : index
    %372 = vector.load %arg11[%371, %c0_110] : memref<16x96xf32, #tpu.memory_space<vmem>>, vector<2x96xf32>
    %cst_111 = arith.constant dense<0.000000e+00> : vector<2x96xf32>
    %373 = tpu.matmul %366, %291, %cst_111 {dimension_numbers = #tpu.dot_dimension_numbers<[1], [0], [0], [1], [0, 0, 1, 1], [], []>} : vector<2x32xf32>, vector<32x96xf32>, vector<2x96xf32> -> vector<2x96xf32>
    %374 = vector.extract_strided_slice %372 {offsets = [0, 0], sizes = [2, 32], strides = [1, 1]} : vector<2x96xf32> to vector<2x32xf32>
    %375 = vector.extract_strided_slice %373 {offsets = [0, 0], sizes = [2, 32], strides = [1, 1]} : vector<2x96xf32> to vector<2x32xf32>
    %376 = arith.addf %374, %375 : vector<2x32xf32>
    %377 = arith.negf %376 : vector<2x32xf32>
    %378 = math.exp %377 : vector<2x32xf32>
    %cst_112 = arith.constant 1.000000e+00 : f32
    %379 = vector.broadcast %cst_112 : f32 to vector<2x32xf32>
    %380 = arith.addf %379, %378 : vector<2x32xf32>
    %381 = arith.divf %379, %380 : vector<2x32xf32>
    %382 = vector.extract_strided_slice %372 {offsets = [0, 32], sizes = [2, 32], strides = [1, 1]} : vector<2x96xf32> to vector<2x32xf32>
    %383 = vector.extract_strided_slice %373 {offsets = [0, 32], sizes = [2, 32], strides = [1, 1]} : vector<2x96xf32> to vector<2x32xf32>
    %384 = arith.addf %382, %383 : vector<2x32xf32>
    %385 = arith.negf %384 : vector<2x32xf32>
    %386 = math.exp %385 : vector<2x32xf32>
    %cst_113 = arith.constant 1.000000e+00 : f32
    %387 = vector.broadcast %cst_113 : f32 to vector<2x32xf32>
    %388 = arith.addf %387, %386 : vector<2x32xf32>
    %389 = arith.divf %387, %388 : vector<2x32xf32>
    %390 = vector.extract_strided_slice %372 {offsets = [0, 64], sizes = [2, 32], strides = [1, 1]} : vector<2x96xf32> to vector<2x32xf32>
    %391 = vector.extract_strided_slice %373 {offsets = [0, 64], sizes = [2, 32], strides = [1, 1]} : vector<2x96xf32> to vector<2x32xf32>
    %392 = vector.broadcast %293 : vector<1x32xf32> to vector<2x32xf32>
    %393 = arith.addf %391, %392 : vector<2x32xf32>
    %394 = arith.mulf %381, %393 : vector<2x32xf32>
    %395 = arith.addf %390, %394 : vector<2x32xf32>
    %396 = math.tanh %395 : vector<2x32xf32>
    %cst_114 = arith.constant 1.000000e+00 : f32
    %397 = vector.broadcast %cst_114 : f32 to vector<2x32xf32>
    %398 = arith.subf %397, %389 : vector<2x32xf32>
    %399 = arith.mulf %398, %396 : vector<2x32xf32>
    %400 = arith.mulf %389, %366 : vector<2x32xf32>
    %401 = arith.addf %399, %400 : vector<2x32xf32>
    %c2_i32_115 = arith.constant 2 : i32
    %402 = arith.muli %c2_i32_108, %c2_i32_115 : i32
    %403 = arith.index_cast %402 : i32 to index
    %c0_116 = arith.constant 0 : index
    %404 = vector.load %arg10[%403, %c0_116] : memref<16x32xf32, #tpu.memory_space<vmem>>, vector<2x32xf32>
    tpu.vector_store %arg10[%403, %c0_116], %401 {strides = array<i32>} : memref<16x32xf32, #tpu.memory_space<vmem>>, vector<2x32xf32>,
    %c3_i32_117 = arith.constant 3 : i32
    %c2_i32_118 = arith.constant 2 : i32
    %405 = arith.muli %c3_i32_117, %c2_i32_118 : i32
    %406 = arith.index_cast %405 : i32 to index
    %c0_119 = arith.constant 0 : index
    %407 = vector.load %arg11[%406, %c0_119] : memref<16x96xf32, #tpu.memory_space<vmem>>, vector<2x96xf32>
    %cst_120 = arith.constant dense<0.000000e+00> : vector<2x96xf32>
    %408 = tpu.matmul %401, %291, %cst_120 {dimension_numbers = #tpu.dot_dimension_numbers<[1], [0], [0], [1], [0, 0, 1, 1], [], []>} : vector<2x32xf32>, vector<32x96xf32>, vector<2x96xf32> -> vector<2x96xf32>
    %409 = vector.extract_strided_slice %407 {offsets = [0, 0], sizes = [2, 32], strides = [1, 1]} : vector<2x96xf32> to vector<2x32xf32>
    %410 = vector.extract_strided_slice %408 {offsets = [0, 0], sizes = [2, 32], strides = [1, 1]} : vector<2x96xf32> to vector<2x32xf32>
    %411 = arith.addf %409, %410 : vector<2x32xf32>
    %412 = arith.negf %411 : vector<2x32xf32>
    %413 = math.exp %412 : vector<2x32xf32>
    %cst_121 = arith.constant 1.000000e+00 : f32
    %414 = vector.broadcast %cst_121 : f32 to vector<2x32xf32>
    %415 = arith.addf %414, %413 : vector<2x32xf32>
    %416 = arith.divf %414, %415 : vector<2x32xf32>
    %417 = vector.extract_strided_slice %407 {offsets = [0, 32], sizes = [2, 32], strides = [1, 1]} : vector<2x96xf32> to vector<2x32xf32>
    %418 = vector.extract_strided_slice %408 {offsets = [0, 32], sizes = [2, 32], strides = [1, 1]} : vector<2x96xf32> to vector<2x32xf32>
    %419 = arith.addf %417, %418 : vector<2x32xf32>
    %420 = arith.negf %419 : vector<2x32xf32>
    %421 = math.exp %420 : vector<2x32xf32>
    %cst_122 = arith.constant 1.000000e+00 : f32
    %422 = vector.broadcast %cst_122 : f32 to vector<2x32xf32>
    %423 = arith.addf %422, %421 : vector<2x32xf32>
    %424 = arith.divf %422, %423 : vector<2x32xf32>
    %425 = vector.extract_strided_slice %407 {offsets = [0, 64], sizes = [2, 32], strides = [1, 1]} : vector<2x96xf32> to vector<2x32xf32>
    %426 = vector.extract_strided_slice %408 {offsets = [0, 64], sizes = [2, 32], strides = [1, 1]} : vector<2x96xf32> to vector<2x32xf32>
    %427 = vector.broadcast %293 : vector<1x32xf32> to vector<2x32xf32>
    %428 = arith.addf %426, %427 : vector<2x32xf32>
    %429 = arith.mulf %416, %428 : vector<2x32xf32>
    %430 = arith.addf %425, %429 : vector<2x32xf32>
    %431 = math.tanh %430 : vector<2x32xf32>
    %cst_123 = arith.constant 1.000000e+00 : f32
    %432 = vector.broadcast %cst_123 : f32 to vector<2x32xf32>
    %433 = arith.subf %432, %424 : vector<2x32xf32>
    %434 = arith.mulf %433, %431 : vector<2x32xf32>
    %435 = arith.mulf %424, %401 : vector<2x32xf32>
    %436 = arith.addf %434, %435 : vector<2x32xf32>
    %c2_i32_124 = arith.constant 2 : i32
    %437 = arith.muli %c3_i32_117, %c2_i32_124 : i32
    %438 = arith.index_cast %437 : i32 to index
    %c0_125 = arith.constant 0 : index
    %439 = vector.load %arg10[%438, %c0_125] : memref<16x32xf32, #tpu.memory_space<vmem>>, vector<2x32xf32>
    tpu.vector_store %arg10[%438, %c0_125], %436 {strides = array<i32>} : memref<16x32xf32, #tpu.memory_space<vmem>>, vector<2x32xf32>,
    %c4_i32_126 = arith.constant 4 : i32
    %c2_i32_127 = arith.constant 2 : i32
    %440 = arith.muli %c4_i32_126, %c2_i32_127 : i32
    %441 = arith.index_cast %440 : i32 to index
    %c0_128 = arith.constant 0 : index
    %442 = vector.load %arg11[%441, %c0_128] : memref<16x96xf32, #tpu.memory_space<vmem>>, vector<2x96xf32>
    %cst_129 = arith.constant dense<0.000000e+00> : vector<2x96xf32>
    %443 = tpu.matmul %436, %291, %cst_129 {dimension_numbers = #tpu.dot_dimension_numbers<[1], [0], [0], [1], [0, 0, 1, 1], [], []>} : vector<2x32xf32>, vector<32x96xf32>, vector<2x96xf32> -> vector<2x96xf32>
    %444 = vector.extract_strided_slice %442 {offsets = [0, 0], sizes = [2, 32], strides = [1, 1]} : vector<2x96xf32> to vector<2x32xf32>
    %445 = vector.extract_strided_slice %443 {offsets = [0, 0], sizes = [2, 32], strides = [1, 1]} : vector<2x96xf32> to vector<2x32xf32>
    %446 = arith.addf %444, %445 : vector<2x32xf32>
    %447 = arith.negf %446 : vector<2x32xf32>
    %448 = math.exp %447 : vector<2x32xf32>
    %cst_130 = arith.constant 1.000000e+00 : f32
    %449 = vector.broadcast %cst_130 : f32 to vector<2x32xf32>
    %450 = arith.addf %449, %448 : vector<2x32xf32>
    %451 = arith.divf %449, %450 : vector<2x32xf32>
    %452 = vector.extract_strided_slice %442 {offsets = [0, 32], sizes = [2, 32], strides = [1, 1]} : vector<2x96xf32> to vector<2x32xf32>
    %453 = vector.extract_strided_slice %443 {offsets = [0, 32], sizes = [2, 32], strides = [1, 1]} : vector<2x96xf32> to vector<2x32xf32>
    %454 = arith.addf %452, %453 : vector<2x32xf32>
    %455 = arith.negf %454 : vector<2x32xf32>
    %456 = math.exp %455 : vector<2x32xf32>
    %cst_131 = arith.constant 1.000000e+00 : f32
    %457 = vector.broadcast %cst_131 : f32 to vector<2x32xf32>
    %458 = arith.addf %457, %456 : vector<2x32xf32>
    %459 = arith.divf %457, %458 : vector<2x32xf32>
    %460 = vector.extract_strided_slice %442 {offsets = [0, 64], sizes = [2, 32], strides = [1, 1]} : vector<2x96xf32> to vector<2x32xf32>
    %461 = vector.extract_strided_slice %443 {offsets = [0, 64], sizes = [2, 32], strides = [1, 1]} : vector<2x96xf32> to vector<2x32xf32>
    %462 = vector.broadcast %293 : vector<1x32xf32> to vector<2x32xf32>
    %463 = arith.addf %461, %462 : vector<2x32xf32>
    %464 = arith.mulf %451, %463 : vector<2x32xf32>
    %465 = arith.addf %460, %464 : vector<2x32xf32>
    %466 = math.tanh %465 : vector<2x32xf32>
    %cst_132 = arith.constant 1.000000e+00 : f32
    %467 = vector.broadcast %cst_132 : f32 to vector<2x32xf32>
    %468 = arith.subf %467, %459 : vector<2x32xf32>
    %469 = arith.mulf %468, %466 : vector<2x32xf32>
    %470 = arith.mulf %459, %436 : vector<2x32xf32>
    %471 = arith.addf %469, %470 : vector<2x32xf32>
    %c2_i32_133 = arith.constant 2 : i32
    %472 = arith.muli %c4_i32_126, %c2_i32_133 : i32
    %473 = arith.index_cast %472 : i32 to index
    %c0_134 = arith.constant 0 : index
    %474 = vector.load %arg10[%473, %c0_134] : memref<16x32xf32, #tpu.memory_space<vmem>>, vector<2x32xf32>
    tpu.vector_store %arg10[%473, %c0_134], %471 {strides = array<i32>} : memref<16x32xf32, #tpu.memory_space<vmem>>, vector<2x32xf32>,
    %c5_i32_135 = arith.constant 5 : i32
    %c2_i32_136 = arith.constant 2 : i32
    %475 = arith.muli %c5_i32_135, %c2_i32_136 : i32
    %476 = arith.index_cast %475 : i32 to index
    %c0_137 = arith.constant 0 : index
    %477 = vector.load %arg11[%476, %c0_137] : memref<16x96xf32, #tpu.memory_space<vmem>>, vector<2x96xf32>
    %cst_138 = arith.constant dense<0.000000e+00> : vector<2x96xf32>
    %478 = tpu.matmul %471, %291, %cst_138 {dimension_numbers = #tpu.dot_dimension_numbers<[1], [0], [0], [1], [0, 0, 1, 1], [], []>} : vector<2x32xf32>, vector<32x96xf32>, vector<2x96xf32> -> vector<2x96xf32>
    %479 = vector.extract_strided_slice %477 {offsets = [0, 0], sizes = [2, 32], strides = [1, 1]} : vector<2x96xf32> to vector<2x32xf32>
    %480 = vector.extract_strided_slice %478 {offsets = [0, 0], sizes = [2, 32], strides = [1, 1]} : vector<2x96xf32> to vector<2x32xf32>
    %481 = arith.addf %479, %480 : vector<2x32xf32>
    %482 = arith.negf %481 : vector<2x32xf32>
    %483 = math.exp %482 : vector<2x32xf32>
    %cst_139 = arith.constant 1.000000e+00 : f32
    %484 = vector.broadcast %cst_139 : f32 to vector<2x32xf32>
    %485 = arith.addf %484, %483 : vector<2x32xf32>
    %486 = arith.divf %484, %485 : vector<2x32xf32>
    %487 = vector.extract_strided_slice %477 {offsets = [0, 32], sizes = [2, 32], strides = [1, 1]} : vector<2x96xf32> to vector<2x32xf32>
    %488 = vector.extract_strided_slice %478 {offsets = [0, 32], sizes = [2, 32], strides = [1, 1]} : vector<2x96xf32> to vector<2x32xf32>
    %489 = arith.addf %487, %488 : vector<2x32xf32>
    %490 = arith.negf %489 : vector<2x32xf32>
    %491 = math.exp %490 : vector<2x32xf32>
    %cst_140 = arith.constant 1.000000e+00 : f32
    %492 = vector.broadcast %cst_140 : f32 to vector<2x32xf32>
    %493 = arith.addf %492, %491 : vector<2x32xf32>
    %494 = arith.divf %492, %493 : vector<2x32xf32>
    %495 = vector.extract_strided_slice %477 {offsets = [0, 64], sizes = [2, 32], strides = [1, 1]} : vector<2x96xf32> to vector<2x32xf32>
    %496 = vector.extract_strided_slice %478 {offsets = [0, 64], sizes = [2, 32], strides = [1, 1]} : vector<2x96xf32> to vector<2x32xf32>
    %497 = vector.broadcast %293 : vector<1x32xf32> to vector<2x32xf32>
    %498 = arith.addf %496, %497 : vector<2x32xf32>
    %499 = arith.mulf %486, %498 : vector<2x32xf32>
    %500 = arith.addf %495, %499 : vector<2x32xf32>
    %501 = math.tanh %500 : vector<2x32xf32>
    %cst_141 = arith.constant 1.000000e+00 : f32
    %502 = vector.broadcast %cst_141 : f32 to vector<2x32xf32>
    %503 = arith.subf %502, %494 : vector<2x32xf32>
    %504 = arith.mulf %503, %501 : vector<2x32xf32>
    %505 = arith.mulf %494, %471 : vector<2x32xf32>
    %506 = arith.addf %504, %505 : vector<2x32xf32>
    %c2_i32_142 = arith.constant 2 : i32
    %507 = arith.muli %c5_i32_135, %c2_i32_142 : i32
    %508 = arith.index_cast %507 : i32 to index
    %c0_143 = arith.constant 0 : index
    %509 = vector.load %arg10[%508, %c0_143] : memref<16x32xf32, #tpu.memory_space<vmem>>, vector<2x32xf32>
    tpu.vector_store %arg10[%508, %c0_143], %506 {strides = array<i32>} : memref<16x32xf32, #tpu.memory_space<vmem>>, vector<2x32xf32>,
    %c6_i32_144 = arith.constant 6 : i32
    %c2_i32_145 = arith.constant 2 : i32
    %510 = arith.muli %c6_i32_144, %c2_i32_145 : i32
    %511 = arith.index_cast %510 : i32 to index
    %c0_146 = arith.constant 0 : index
    %512 = vector.load %arg11[%511, %c0_146] : memref<16x96xf32, #tpu.memory_space<vmem>>, vector<2x96xf32>
    %cst_147 = arith.constant dense<0.000000e+00> : vector<2x96xf32>
    %513 = tpu.matmul %506, %291, %cst_147 {dimension_numbers = #tpu.dot_dimension_numbers<[1], [0], [0], [1], [0, 0, 1, 1], [], []>} : vector<2x32xf32>, vector<32x96xf32>, vector<2x96xf32> -> vector<2x96xf32>
    %514 = vector.extract_strided_slice %512 {offsets = [0, 0], sizes = [2, 32], strides = [1, 1]} : vector<2x96xf32> to vector<2x32xf32>
    %515 = vector.extract_strided_slice %513 {offsets = [0, 0], sizes = [2, 32], strides = [1, 1]} : vector<2x96xf32> to vector<2x32xf32>
    %516 = arith.addf %514, %515 : vector<2x32xf32>
    %517 = arith.negf %516 : vector<2x32xf32>
    %518 = math.exp %517 : vector<2x32xf32>
    %cst_148 = arith.constant 1.000000e+00 : f32
    %519 = vector.broadcast %cst_148 : f32 to vector<2x32xf32>
    %520 = arith.addf %519, %518 : vector<2x32xf32>
    %521 = arith.divf %519, %520 : vector<2x32xf32>
    %522 = vector.extract_strided_slice %512 {offsets = [0, 32], sizes = [2, 32], strides = [1, 1]} : vector<2x96xf32> to vector<2x32xf32>
    %523 = vector.extract_strided_slice %513 {offsets = [0, 32], sizes = [2, 32], strides = [1, 1]} : vector<2x96xf32> to vector<2x32xf32>
    %524 = arith.addf %522, %523 : vector<2x32xf32>
    %525 = arith.negf %524 : vector<2x32xf32>
    %526 = math.exp %525 : vector<2x32xf32>
    %cst_149 = arith.constant 1.000000e+00 : f32
    %527 = vector.broadcast %cst_149 : f32 to vector<2x32xf32>
    %528 = arith.addf %527, %526 : vector<2x32xf32>
    %529 = arith.divf %527, %528 : vector<2x32xf32>
    %530 = vector.extract_strided_slice %512 {offsets = [0, 64], sizes = [2, 32], strides = [1, 1]} : vector<2x96xf32> to vector<2x32xf32>
    %531 = vector.extract_strided_slice %513 {offsets = [0, 64], sizes = [2, 32], strides = [1, 1]} : vector<2x96xf32> to vector<2x32xf32>
    %532 = vector.broadcast %293 : vector<1x32xf32> to vector<2x32xf32>
    %533 = arith.addf %531, %532 : vector<2x32xf32>
    %534 = arith.mulf %521, %533 : vector<2x32xf32>
    %535 = arith.addf %530, %534 : vector<2x32xf32>
    %536 = math.tanh %535 : vector<2x32xf32>
    %cst_150 = arith.constant 1.000000e+00 : f32
    %537 = vector.broadcast %cst_150 : f32 to vector<2x32xf32>
    %538 = arith.subf %537, %529 : vector<2x32xf32>
    %539 = arith.mulf %538, %536 : vector<2x32xf32>
    %540 = arith.mulf %529, %506 : vector<2x32xf32>
    %541 = arith.addf %539, %540 : vector<2x32xf32>
    %c2_i32_151 = arith.constant 2 : i32
    %542 = arith.muli %c6_i32_144, %c2_i32_151 : i32
    %543 = arith.index_cast %542 : i32 to index
    %c0_152 = arith.constant 0 : index
    %544 = vector.load %arg10[%543, %c0_152] : memref<16x32xf32, #tpu.memory_space<vmem>>, vector<2x32xf32>
    tpu.vector_store %arg10[%543, %c0_152], %541 {strides = array<i32>} : memref<16x32xf32, #tpu.memory_space<vmem>>, vector<2x32xf32>,
    %c7_i32_153 = arith.constant 7 : i32
    %c2_i32_154 = arith.constant 2 : i32
    %545 = arith.muli %c7_i32_153, %c2_i32_154 : i32
    %546 = arith.index_cast %545 : i32 to index
    %c0_155 = arith.constant 0 : index
    %547 = vector.load %arg11[%546, %c0_155] : memref<16x96xf32, #tpu.memory_space<vmem>>, vector<2x96xf32>
    %cst_156 = arith.constant dense<0.000000e+00> : vector<2x96xf32>
    %548 = tpu.matmul %541, %291, %cst_156 {dimension_numbers = #tpu.dot_dimension_numbers<[1], [0], [0], [1], [0, 0, 1, 1], [], []>} : vector<2x32xf32>, vector<32x96xf32>, vector<2x96xf32> -> vector<2x96xf32>
    %549 = vector.extract_strided_slice %547 {offsets = [0, 0], sizes = [2, 32], strides = [1, 1]} : vector<2x96xf32> to vector<2x32xf32>
    %550 = vector.extract_strided_slice %548 {offsets = [0, 0], sizes = [2, 32], strides = [1, 1]} : vector<2x96xf32> to vector<2x32xf32>
    %551 = arith.addf %549, %550 : vector<2x32xf32>
    %552 = arith.negf %551 : vector<2x32xf32>
    %553 = math.exp %552 : vector<2x32xf32>
    %cst_157 = arith.constant 1.000000e+00 : f32
    %554 = vector.broadcast %cst_157 : f32 to vector<2x32xf32>
    %555 = arith.addf %554, %553 : vector<2x32xf32>
    %556 = arith.divf %554, %555 : vector<2x32xf32>
    %557 = vector.extract_strided_slice %547 {offsets = [0, 32], sizes = [2, 32], strides = [1, 1]} : vector<2x96xf32> to vector<2x32xf32>
    %558 = vector.extract_strided_slice %548 {offsets = [0, 32], sizes = [2, 32], strides = [1, 1]} : vector<2x96xf32> to vector<2x32xf32>
    %559 = arith.addf %557, %558 : vector<2x32xf32>
    %560 = arith.negf %559 : vector<2x32xf32>
    %561 = math.exp %560 : vector<2x32xf32>
    %cst_158 = arith.constant 1.000000e+00 : f32
    %562 = vector.broadcast %cst_158 : f32 to vector<2x32xf32>
    %563 = arith.addf %562, %561 : vector<2x32xf32>
    %564 = arith.divf %562, %563 : vector<2x32xf32>
    %565 = vector.extract_strided_slice %547 {offsets = [0, 64], sizes = [2, 32], strides = [1, 1]} : vector<2x96xf32> to vector<2x32xf32>
    %566 = vector.extract_strided_slice %548 {offsets = [0, 64], sizes = [2, 32], strides = [1, 1]} : vector<2x96xf32> to vector<2x32xf32>
    %567 = vector.broadcast %293 : vector<1x32xf32> to vector<2x32xf32>
    %568 = arith.addf %566, %567 : vector<2x32xf32>
    %569 = arith.mulf %556, %568 : vector<2x32xf32>
    %570 = arith.addf %565, %569 : vector<2x32xf32>
    %571 = math.tanh %570 : vector<2x32xf32>
    %cst_159 = arith.constant 1.000000e+00 : f32
    %572 = vector.broadcast %cst_159 : f32 to vector<2x32xf32>
    %573 = arith.subf %572, %564 : vector<2x32xf32>
    %574 = arith.mulf %573, %571 : vector<2x32xf32>
    %575 = arith.mulf %564, %541 : vector<2x32xf32>
    %576 = arith.addf %574, %575 : vector<2x32xf32>
    %c2_i32_160 = arith.constant 2 : i32
    %577 = arith.muli %c7_i32_153, %c2_i32_160 : i32
    %578 = arith.index_cast %577 : i32 to index
    %c0_161 = arith.constant 0 : index
    %579 = vector.load %arg10[%578, %c0_161] : memref<16x32xf32, #tpu.memory_space<vmem>>, vector<2x32xf32>
    tpu.vector_store %arg10[%578, %c0_161], %576 {strides = array<i32>} : memref<16x32xf32, #tpu.memory_space<vmem>>, vector<2x32xf32>,
    %c8_i32_162 = arith.constant 8 : i32
    return
  }
  func.func @transform_0(%arg0: i32) -> (i32, i32) {
    %c0_i32 = arith.constant 0 : i32
    %c0_i32_0 = arith.constant 0 : i32
    %c0_i32_1 = arith.constant 0 : i32
    return %c0_i32, %c0_i32_0 : i32, i32
  }
  func.func @transform_1(%arg0: i32) -> (i32, i32) {
    %c0_i32 = arith.constant 0 : i32
    %c0_i32_0 = arith.constant 0 : i32
    %c0_i32_1 = arith.constant 0 : i32
    return %c0_i32, %c0_i32_0 : i32, i32
  }
  func.func @transform_2(%arg0: i32) -> (i32, i32) {
    %c0_i32 = arith.constant 0 : i32
    %c0_i32_0 = arith.constant 0 : i32
    %c0_i32_1 = arith.constant 0 : i32
    return %c0_i32, %c0_i32_0 : i32, i32
  }
  func.func @transform_3(%arg0: i32) -> (i32, i32) {
    %c0_i32 = arith.constant 0 : i32
    %c0_i32_0 = arith.constant 0 : i32
    %c0_i32_1 = arith.constant 0 : i32
    return %c0_i32, %c0_i32_0 : i32, i32
  }
  func.func @transform_4(%arg0: i32) -> (i32, i32) {
    %c0_i32 = arith.constant 0 : i32
    %c0_i32_0 = arith.constant 0 : i32
    %c0_i32_1 = arith.constant 0 : i32
    return %c0_i32, %c0_i32_0 : i32, i32
  }
  func.func @transform_5(%arg0: i32) -> (i32, i32) {
    %c0_i32 = arith.constant 0 : i32
    %c0_i32_0 = arith.constant 0 : i32
    %c0_i32_1 = arith.constant 0 : i32
    return %c0_i32, %c0_i32_0 : i32, i32
  }
  func.func @transform_6(%arg0: i32) -> (i32, i32) {
    %c0_i32 = arith.constant 0 : i32
    %c0_i32_0 = arith.constant 0 : i32
    %c0_i32_1 = arith.constant 0 : i32
    return %c0_i32, %c0_i32_0 : i32, i32
  }
  func.func @transform_7(%arg0: i32) -> (i32, i32) {
    %c0_i32 = arith.constant 0 : i32
    %c0_i32_0 = arith.constant 0 : i32
    %c0_i32_1 = arith.constant 0 : i32
    return %c0_i32, %c0_i32_0 : i32, i32
  }
  func.func @transform_8(%arg0: i32) -> (i32, i32) {
    %c0_i32 = arith.constant 0 : i32
    %c0_i32_0 = arith.constant 0 : i32
    %c0_i32_1 = arith.constant 0 : i32
    return %c0_i32, %c0_i32_0 : i32, i32
  }
  func.func @transform_9(%arg0: i32) -> (i32, i32) {
    %c0_i32 = arith.constant 0 : i32
    %c0_i32_0 = arith.constant 0 : i32
    %c0_i32_1 = arith.constant 0 : i32
    return %c0_i32, %c0_i32_0 : i32, i32
  }
}

</mosaic_0001>

<llo_original>
// kernel: mod_gru_forward.1
$region0: #{mod_gru_forward.1}
  #allocation0 [shape = 'u32[]', space=smem, size = 0x4, offset = 0x4, fixed_abs, tag = 'smem constant byte address 0x4 - core index']
  #allocation1 [shape = 'u32[72,128]{1,0:T(1,128)}', space=vmem, size = 0x9000, scoped, tag = 'internal scratch']
  #allocation2 [shape = 'f32[16,96]{1,0:T(8,128)}', space=vmem, size = 0x2000, scoped, tag = 'scratch operand']
  %s0 = inlined_call_operand.vmem [shape: f32[16,4], index: 0, kind: input, shape index: {}]
  %s1 = inlined_call_operand.hbm [shape: f32[4,96], index: 1, kind: input, shape index: {}]
  %s2 = inlined_call_operand.hbm [shape: f32[32,96], index: 2, kind: input, shape index: {}]
  %s3 = inlined_call_operand.vmem [shape: f32[1,96], index: 3, kind: input, shape index: {}]
  %s4 = inlined_call_operand.hbm [shape: f32[1,32], index: 4, kind: input, shape index: {}]
  %s5 = inlined_call_operand.vmem [shape: f32[32,96], index: 5, kind: input, shape index: {}]
  %s6 = inlined_call_operand.hbm [shape: f32[32,96], index: 6, kind: input, shape index: {}]
  %s7 = inlined_call_operand.hbm [shape: f32[1,96], index: 7, kind: input, shape index: {}]
  %s8 = inlined_call_operand.hbm [shape: f32[1,32], index: 8, kind: input, shape index: {}]
  %s9 = inlined_call_operand.vmem [shape: f32[16,32], index: 9, kind: output, shape index: {}]
  %s10 = sld [smem:[#allocation0]]
  $region70: #{mod_gru_forward.1} parent=0
    _
  %s12 = ssub.s32 1, %s10
  %s13 = scalar_select 0, %s12, %s10
  $region1: #{mod_gru_forward.1} parent=0
    #allocation3 [shape = 'u8[2048]{0}', space=vmem, size = 0x800, scoped, tag = 'input window, operand 1, single buffered']
    #allocation4 [shape = 's32[1]{0}', space=sflag, size = 0x4, scoped, tag = 'scoped memory for mod_gru_forward.1']
    #allocation5 [shape = 'u8[16384]{0}', space=vmem, size = 0x4000, scoped, tag = 'input window, operand 2, single buffered']
    #allocation6 [shape = 's32[1]{0}', space=sflag, size = 0x4, scoped, tag = 'scoped memory for mod_gru_forward.1']
    #allocation7 [shape = 'u8[512]{0}', space=vmem, size = 0x400, scoped, tag = 'input window, operand 4, single buffered']
    #allocation8 [shape = 'u8[16384]{0}', space=vmem, size = 0x4000, scoped, tag = 'input window, operand 6, single buffered']
    #allocation9 [shape = 's32[1]{0}', space=sflag, size = 0x4, scoped, tag = 'scoped memory for mod_gru_forward.1']
    #allocation10 [shape = 'u8[512]{0}', space=vmem, size = 0x400, scoped, tag = 'input window, operand 7, single buffered']
    #allocation11 [shape = 'u8[512]{0}', space=vmem, size = 0x400, scoped, tag = 'input window, operand 8, single buffered']
    #allocation12 [shape = 's32[1]{0}', space=sflag, size = 0x4, scoped, tag = 'scoped memory for mod_gru_forward.1']
    %14 = vsyncpa [#allocation4], 0
    %15 = vsyncpa [#allocation6], 0
    %16 = vsyncpa [#allocation9], 0
    %17 = vsyncpa [#allocation12], 0
    // Predicated region
    $region2: #{mod_gru_forward.1} parent=1 // pred_check
      _
    $region3: #{mod_gru_forward.1} parent=1 // pred_check_branch
      %19 = sbr.rel (0) target = $region5
    $region4: #{mod_gru_forward.1} parent=1 // pred_region
      _
    $region5: #{mod_gru_forward.1} parent=1 // pred_fallthru
      _
    // Predicated region
    $region6: #{mod_gru_forward.1} parent=1 // pred_check
      _
    $region7: #{mod_gru_forward.1} parent=1 // pred_check_branch
      %21 = sbr.rel (0) target = $region9
    $region8: #{mod_gru_forward.1} parent=1 // pred_region
      %23 = vsyncadd [#allocation4], 0
      %s25 = sshll.u32 %s1, 4
      %s26 = int_to_ptr.hbm [resolvable:$true] %s25
      %s27 = sshll.u32 [#allocation3], 4
      %s28 = int_to_ptr.vmem [resolvable:$true] %s27
      %30 = dma.hbm_to_vmem [thread:$0]  %s26, 64, %s28, [#allocation4]
    $region9: #{mod_gru_forward.1} parent=1 // pred_fallthru
      _
    // Predicated region
    $region10: #{mod_gru_forward.1} parent=1 // pred_check
      _
    $region11: #{mod_gru_forward.1} parent=1 // pred_check_branch
      %32 = sbr.rel (0) target = $region13
    $region12: #{mod_gru_forward.1} parent=1 // pred_region
      %34 = vsyncadd [#allocation6], 0
      %s35 = sshll.u32 %s2, 4
      %s36 = int_to_ptr.hbm [resolvable:$true] %s35
      %s37 = sshll.u32 [#allocation5], 4
      %s38 = int_to_ptr.vmem [resolvable:$true] %s37
      %43 = dma.hbm_to_vmem [thread:$0]  %s36, 512, %s38, [#allocation6], 128, 128, 8
    $region13: #{mod_gru_forward.1} parent=1 // pred_fallthru
      _
    // Predicated region
    $region14: #{mod_gru_forward.1} parent=1 // pred_check
      _
    $region15: #{mod_gru_forward.1} parent=1 // pred_check_branch
      %45 = sbr.rel (0) target = $region17
    $region16: #{mod_gru_forward.1} parent=1 // pred_region
      _
    $region17: #{mod_gru_forward.1} parent=1 // pred_fallthru
      _
    // Predicated region
    $region18: #{mod_gru_forward.1} parent=1 // pred_check
      _
    $region19: #{mod_gru_forward.1} parent=1 // pred_check_branch
      %47 = sbr.rel (0) target = $region21
    $region20: #{mod_gru_forward.1} parent=1 // pred_region
      %49 = vsyncadd [#allocation6], 0
      %s51 = sshll.u32 %s4, 4
      %s52 = int_to_ptr.hbm [resolvable:$true] %s51
      %s53 = sshll.u32 [#allocation7], 4
      %s54 = int_to_ptr.vmem [resolvable:$true] %s53
      %56 = dma.hbm_to_vmem [thread:$0]  %s52, 16, %s54, [#allocation6]
    $region21: #{mod_gru_forward.1} parent=1 // pred_fallthru
      _
    // Predicated region
    $region22: #{mod_gru_forward.1} parent=1 // pred_check
      _
    $region23: #{mod_gru_forward.1} parent=1 // pred_check_branch
      %58 = sbr.rel (0) target = $region25
    $region24: #{mod_gru_forward.1} parent=1 // pred_region
      _
    $region25: #{mod_gru_forward.1} parent=1 // pred_fallthru
      _
    // Predicated region
    $region26: #{mod_gru_forward.1} parent=1 // pred_check
      _
    $region27: #{mod_gru_forward.1} parent=1 // pred_check_branch
      %60 = sbr.rel (0) target = $region29
    $region28: #{mod_gru_forward.1} parent=1 // pred_region
      %62 = vsyncadd [#allocation9], 0
      %s63 = sshll.u32 %s6, 4
      %s64 = int_to_ptr.hbm [resolvable:$true] %s63
      %s65 = sshll.u32 [#allocation8], 4
      %s66 = int_to_ptr.vmem [resolvable:$true] %s65
      %71 = dma.hbm_to_vmem [thread:$0]  %s64, 512, %s66, [#allocation9], 128, 128, 8
    $region29: #{mod_gru_forward.1} parent=1 // pred_fallthru
      _
    // Predicated region
    $region30: #{mod_gru_forward.1} parent=1 // pred_check
      _
    $region31: #{mod_gru_forward.1} parent=1 // pred_check_branch
      %73 = sbr.rel (0) target = $region33
    $region32: #{mod_gru_forward.1} parent=1 // pred_region
      %75 = vsyncadd [#allocation9], 0
      %s77 = sshll.u32 %s7, 4
      %s78 = int_to_ptr.hbm [resolvable:$true] %s77
      %s79 = sshll.u32 [#allocation10], 4
      %s80 = int_to_ptr.vmem [resolvable:$true] %s79
      %82 = dma.hbm_to_vmem [thread:$0]  %s78, 16, %s80, [#allocation9]
    $region33: #{mod_gru_forward.1} parent=1 // pred_fallthru
      _
    // Predicated region
    $region34: #{mod_gru_forward.1} parent=1 // pred_check
      _
    $region35: #{mod_gru_forward.1} parent=1 // pred_check_branch
      %84 = sbr.rel (0) target = $region37
    $region36: #{mod_gru_forward.1} parent=1 // pred_region
      %86 = vsyncadd [#allocation12], 0
      %s88 = sshll.u32 %s8, 4
      %s89 = int_to_ptr.hbm [resolvable:$true] %s88
      %s90 = sshll.u32 [#allocation11], 4
      %s91 = int_to_ptr.vmem [resolvable:$true] %s90
      %93 = dma.hbm_to_vmem [thread:$0]  %s89, 16, %s91, [#allocation12]
    $region37: #{mod_gru_forward.1} parent=1 // pred_fallthru
      _
    // Predicated region
    $region38: #{mod_gru_forward.1} parent=1 // pred_check
      _
    $region39: #{mod_gru_forward.1} parent=1 // pred_check_branch
      %95 = sbr.rel (0) target = $region41
    $region40: #{mod_gru_forward.1} parent=1 // pred_region
      %97 = dma.done [#allocation4], 64
    $region41: #{mod_gru_forward.1} parent=1 // pred_fallthru
      _
    // Predicated region
    $region42: #{mod_gru_forward.1} parent=1 // pred_check
      _
    $region43: #{mod_gru_forward.1} parent=1 // pred_check_branch
      %99 = sbr.rel (0) target = $region45
    $region44: #{mod_gru_forward.1} parent=1 // pred_region
      %101 = dma.done [#allocation6], 512
    $region45: #{mod_gru_forward.1} parent=1 // pred_fallthru
      _
    // Predicated region
    $region46: #{mod_gru_forward.1} parent=1 // pred_check
      _
    $region47: #{mod_gru_forward.1} parent=1 // pred_check_branch
      %103 = sbr.rel (0) target = $region49
    $region48: #{mod_gru_forward.1} parent=1 // pred_region
      %105 = dma.done [#allocation6], 16
    $region49: #{mod_gru_forward.1} parent=1 // pred_fallthru
      _
    // Predicated region
    $region50: #{mod_gru_forward.1} parent=1 // pred_check
      _
    $region51: #{mod_gru_forward.1} parent=1 // pred_check_branch
      %107 = sbr.rel (0) target = $region53
    $region52: #{mod_gru_forward.1} parent=1 // pred_region
      %109 = dma.done [#allocation9], 512
    $region53: #{mod_gru_forward.1} parent=1 // pred_fallthru
      _
    // Predicated region
    $region54: #{mod_gru_forward.1} parent=1 // pred_check
      _
    $region55: #{mod_gru_forward.1} parent=1 // pred_check_branch
      %111 = sbr.rel (0) target = $region57
    $region56: #{mod_gru_forward.1} parent=1 // pred_region
      %113 = dma.done [#allocation9], 16
    $region57: #{mod_gru_forward.1} parent=1 // pred_fallthru
      _
    // Predicated region
    $region58: #{mod_gru_forward.1} parent=1 // pred_check
      _
    $region59: #{mod_gru_forward.1} parent=1 // pred_check_branch
      %115 = sbr.rel (0) target = $region61
    $region60: #{mod_gru_forward.1} parent=1 // pred_region
      %117 = dma.done [#allocation12], 16
    $region61: #{mod_gru_forward.1} parent=1 // pred_fallthru
      _
    %v118 = vld [vmem:[#allocation3] sm:$0xf]
    %v119 = vld [vmem:[#allocation5] sm:$0xff]
    %v120 = vld [vmem:[#allocation5 + $0x8] sm:$0xff]
    %v121 = vld [vmem:[#allocation5 + $0x10] sm:$0xff]
    %v122 = vld [vmem:[#allocation5 + $0x18] sm:$0xff]
    %v123 = vld [vmem:[%s3] sm:$0x1]
    %v124 = vld [vmem:[#allocation7] sm:$0x1]
    %v125 = vld [vmem:[%s0] sm:$0xff]
    %v126 = vld [vmem:[%s0 + $0x8] sm:$0xff]
    %v128 = vperm.slane %v123, 0
    %vm130 = vcmask 31744
    %v132 = vsel %vm130, %v125, 0
    %v135 = vsel %vm130, %v126, 0
    %vm137 = vcmask 1043456
    %v139 = vsel %vm137, %v118, 0
    %141 = vmatpush.msra.mxu0 0.0
    %142 = vmatpush.msra.mxu0 0.0
    %143 = vmatpush.msra.mxu0 0.0
    %144 = vmatpush.msra.mxu0 0.0
    %145 = vmatpush.msra.mxu0 0.0
    %146 = vmatpush.msra.mxu0 0.0
    %147 = vmatpush.msra.mxu0 0.0
    %148 = vmatpush.msra.mxu0 0.0
    %149 = vmatpush.msra.mxu0 0.0
    %150 = vmatpush.msra.mxu0 0.0
    %151 = vmatpush.msra.mxu0 0.0
    %152 = vmatpush.msra.mxu0 0.0
    %153 = vmatpush.msra.mxu0 0.0
    %154 = vmatpush.msra.mxu0 0.0
    %155 = vmatpush.msra.mxu0 0.0
    %156 = vmatpush.msra.mxu0 %v139
    %157 = vmatmul.f32.gmra.mxu0 %v132
    %v158 = vpop.f32.mrf.mxu0
    %v159 = vadd.f32 %v128, %v158
    %160 = vmatmul.f32.gmra.mxu0 %v135
    %v161 = vpop.f32.mrf.mxu0
    %v162 = vadd.f32 %v128, %v161
    %163 = vdwg.mxu0
    %vm164 = vcmask 785408
    %165 = vst.msk [vmem:[#allocation2] sm:$0xff] %vm164, %v159
    %166 = vst.msk [vmem:[#allocation2 + $0x8] sm:$0xff] %vm164, %v162
    %v167 = vld [vmem:[#allocation2] sm:$0x3]
    %vm168 = vcmask 261120
    %v170 = vsel %vm168, 0.0, 0
    %172 = vmatpush.msra.mxu0 0.0
    %173 = vmatpush.msra.mxu0 0.0
    %174 = vmatpush.msra.mxu0 0.0
    %175 = vmatpush.msra.mxu0 0.0
    %176 = vmatpush.msra.mxu0 0.0
    %177 = vmatpush.msra.mxu0 0.0
    %178 = vmatpush.msra.mxu0 0.0
    %179 = vmatpush.msra.mxu0 0.0
    %180 = vmatpush.msra.mxu0 0.0
    %181 = vmatpush.msra.mxu0 0.0
    %182 = vmatpush.msra.mxu0 0.0
    %183 = vmatpush.msra.mxu0 0.0
    %184 = vmatpush.msra.mxu0 %v122
    %185 = vmatpush.msra.mxu0 %v121
    %186 = vmatpush.msra.mxu0 %v120
    %187 = vmatpush.msra.mxu0 %v119
    %188 = vmatmul.f32.gmra.mxu0 %v170
    %v189 = vpop.f32.mrf.mxu0
    %v190 = vadd.f32 0.0, %v189
    %191 = vdwg.mxu0
    %v192 = vadd.f32 %v167, %v190
    %v193 = vxor.u32 %v192, 2147483648
    %v194 = vmul.f32 %v193, 1.442695
    %v195 = vpow.pop %v194
    %v196 = vadd.f32 %v195, 1.0
    %v197 = vrcp.pop %v196
    %v198 = vmul.f32 %v196, %v197
    %v199 = vsub.f32 1.0, %v198
    %v200 = vmul.f32 %v197, %v199
    %v201 = vadd.f32 %v197, %v200
    %vm202 = vweird.f32 %v196
    %vm203 = vweird.f32 %v197
    %vm204 = vmor %vm202, %vm203
    %v205 = vsel %vm204, %v197, %v201
    %v206 = vand.u32 2147483647, %v196
    %vm207 = vcmp.eq.f32.partialorder %v206, 8.507059e+37
    %v208 = vand.u32 %v196, 2147483648
    %v209 = vor.u32 1.1754944e-38, %v208
    %v210 = vsel %vm207, %v209, %v205
    %v211 = vmul.f32 1.0, %v210
    %v213 = vperm.slane %v124, 0
    %214 = vrot.lane.b32.xlu0 %v213, 64
    %v215 = vpop.permute.xlu0 %214
    %v217 = vadd.f32 %v190, %v215
    %219 = vrot.lane.b32.xlu0 %v217, 64
    %v220 = vpop.permute.xlu0 %219
    %v222 = vmul.f32 %v211, %v220
    %224 = vrot.lane.b32.xlu0 %v222, 64
    %v225 = vpop.permute.xlu0 %224
    %v227 = vadd.f32 %v167, %v225
    %v228 = vtanh.pop %v227
    %v229 = vsub.f32 1.0, %v211
    %231 = vrot.lane.b32.xlu0 %v228, 96
    %v232 = vpop.permute.xlu0 %231
    %v234 = vmul.f32 %v229, %v232
    %v235 = vmul.f32 %v211, 0.0
    %v236 = vadd.f32 %v234, %v235
    %238 = vrot.lane.b32.xlu0 %v236, 96
    %v239 = vpop.permute.xlu0 %238
    %vm241 = vcmask 254976
    %242 = vst.msk [vmem:[%s9] sm:$0x3] %vm241, %v239
    %v243 = vld [vmem:[#allocation2 + $0x2] sm:$0x3]
    %v244 = vsel %vm168, %v239, 0
    %246 = vmatpush.msra.mxu0 0.0
    %247 = vmatpush.msra.mxu0 0.0
    %248 = vmatpush.msra.mxu0 0.0
    %249 = vmatpush.msra.mxu0 0.0
    %250 = vmatpush.msra.mxu0 0.0
    %251 = vmatpush.msra.mxu0 0.0
    %252 = vmatpush.msra.mxu0 0.0
    %253 = vmatpush.msra.mxu0 0.0
    %254 = vmatpush.msra.mxu0 0.0
    %255 = vmatpush.msra.mxu0 0.0
    %256 = vmatpush.msra.mxu0 0.0
    %257 = vmatpush.msra.mxu0 0.0
    %258 = vmatpush.msra.mxu0 %v122
    %259 = vmatpush.msra.mxu0 %v121
    %260 = vmatpush.msra.mxu0 %v120
    %261 = vmatpush.msra.mxu0 %v119
    %262 = vmatmul.f32.gmra.mxu0 %v244
    %v263 = vpop.f32.mrf.mxu0
    %v264 = vadd.f32 0.0, %v263
    %265 = vdwg.mxu0
    %v266 = vadd.f32 %v243, %v264
    %v267 = vxor.u32 %v266, 2147483648
    %v268 = vmul.f32 %v267, 1.442695
    %v269 = vpow.pop %v268
    %v270 = vadd.f32 %v269, 1.0
    %v271 = vrcp.pop %v270
    %v272 = vmul.f32 %v270, %v271
    %v273 = vsub.f32 1.0, %v272
    %v274 = vmul.f32 %v271, %v273
    %v275 = vadd.f32 %v271, %v274
    %vm276 = vweird.f32 %v270
    %vm277 = vweird.f32 %v271
    %vm278 = vmor %vm276, %vm277
    %v279 = vsel %vm278, %v271, %v275
    %v280 = vand.u32 2147483647, %v270
    %vm281 = vcmp.eq.f32.partialorder %v280, 8.507059e+37
    %v282 = vand.u32 %v270, 2147483648
    %v283 = vor.u32 1.1754944e-38, %v282
    %v284 = vsel %vm281, %v283, %v279
    %v285 = vmul.f32 1.0, %v284
    %v286 = vadd.f32 %v264, %v215
    %288 = vrot.lane.b32.xlu0 %v286, 64
    %v289 = vpop.permute.xlu0 %288
    %v291 = vmul.f32 %v285, %v289
    %293 = vrot.lane.b32.xlu0 %v291, 64
    %v294 = vpop.permute.xlu0 %293
    %v296 = vadd.f32 %v243, %v294
    %v297 = vtanh.pop %v296
    %v298 = vsub.f32 1.0, %v285
    %300 = vrot.lane.b32.xlu0 %v297, 96
    %v301 = vpop.permute.xlu0 %300
    %v303 = vmul.f32 %v298, %v301
    %v304 = vmul.f32 %v285, %v236
    %v305 = vadd.f32 %v303, %v304
    %307 = vrot.lane.b32.xlu0 %v305, 96
    %v308 = vpop.permute.xlu0 %307
    %310 = vst.msk [vmem:[%s9 + $0x2] sm:$0x3] %vm241, %v308
    %v311 = vld [vmem:[#allocation2 + $0x4] sm:$0x3]
    %v312 = vsel %vm168, %v308, 0
    %314 = vmatpush.msra.mxu0 0.0
    %315 = vmatpush.msra.mxu0 0.0
    %316 = vmatpush.msra.mxu0 0.0
    %317 = vmatpush.msra.mxu0 0.0
    %318 = vmatpush.msra.mxu0 0.0
    %319 = vmatpush.msra.mxu0 0.0
    %320 = vmatpush.msra.mxu0 0.0
    %321 = vmatpush.msra.mxu0 0.0
    %322 = vmatpush.msra.mxu0 0.0
    %323 = vmatpush.msra.mxu0 0.0
    %324 = vmatpush.msra.mxu0 0.0
    %325 = vmatpush.msra.mxu0 0.0
    %326 = vmatpush.msra.mxu0 %v122
    %327 = vmatpush.msra.mxu0 %v121
    %328 = vmatpush.msra.mxu0 %v120
    %329 = vmatpush.msra.mxu0 %v119
    %330 = vmatmul.f32.gmra.mxu0 %v312
    %v331 = vpop.f32.mrf.mxu0
    %v332 = vadd.f32 0.0, %v331
    %333 = vdwg.mxu0
    %v334 = vadd.f32 %v311, %v332
    %v335 = vxor.u32 %v334, 2147483648
    %v336 = vmul.f32 %v335, 1.442695
    %v337 = vpow.pop %v336
    %v338 = vadd.f32 %v337, 1.0
    %v339 = vrcp.pop %v338
    %v340 = vmul.f32 %v338, %v339
    %v341 = vsub.f32 1.0, %v340
    %v342 = vmul.f32 %v339, %v341
    %v343 = vadd.f32 %v339, %v342
    %vm344 = vweird.f32 %v338
    %vm345 = vweird.f32 %v339
    %vm346 = vmor %vm344, %vm345
    %v347 = vsel %vm346, %v339, %v343
    %v348 = vand.u32 2147483647, %v338
    %vm349 = vcmp.eq.f32.partialorder %v348, 8.507059e+37
    %v350 = vand.u32 %v338, 2147483648
    %v351 = vor.u32 1.1754944e-38, %v350
    %v352 = vsel %vm349, %v351, %v347
    %v353 = vmul.f32 1.0, %v352
    %v354 = vadd.f32 %v332, %v215
    %356 = vrot.lane.b32.xlu0 %v354, 64
    %v357 = vpop.permute.xlu0 %356
    %v359 = vmul.f32 %v353, %v357
    %361 = vrot.lane.b32.xlu0 %v359, 64
    %v362 = vpop.permute.xlu0 %361
    %v364 = vadd.f32 %v311, %v362
    %v365 = vtanh.pop %v364
    %v366 = vsub.f32 1.0, %v353
    %368 = vrot.lane.b32.xlu0 %v365, 96
    %v369 = vpop.permute.xlu0 %368
    %v371 = vmul.f32 %v366, %v369
    %v372 = vmul.f32 %v353, %v305
    %v373 = vadd.f32 %v371, %v372
    %375 = vrot.lane.b32.xlu0 %v373, 96
    %v376 = vpop.permute.xlu0 %375
    %378 = vst.msk [vmem:[%s9 + $0x4] sm:$0x3] %vm241, %v376
    %v379 = vld [vmem:[#allocation2 + $0x6] sm:$0x3]
    %v380 = vsel %vm168, %v376, 0
    %382 = vmatpush.msra.mxu0 0.0
    %383 = vmatpush.msra.mxu0 0.0
    %384 = vmatpush.msra.mxu0 0.0
    %385 = vmatpush.msra.mxu0 0.0
    %386 = vmatpush.msra.mxu0 0.0
    %387 = vmatpush.msra.mxu0 0.0
    %388 = vmatpush.msra.mxu0 0.0
    %389 = vmatpush.msra.mxu0 0.0
    %390 = vmatpush.msra.mxu0 0.0
    %391 = vmatpush.msra.mxu0 0.0
    %392 = vmatpush.msra.mxu0 0.0
    %393 = vmatpush.msra.mxu0 0.0
    %394 = vmatpush.msra.mxu0 %v122
    %395 = vmatpush.msra.mxu0 %v121
    %396 = vmatpush.msra.mxu0 %v120
    %397 = vmatpush.msra.mxu0 %v119
    %398 = vmatmul.f32.gmra.mxu0 %v380
    %v399 = vpop.f32.mrf.mxu0
    %v400 = vadd.f32 0.0, %v399
    %401 = vdwg.mxu0
    %v402 = vadd.f32 %v379, %v400
    %v403 = vxor.u32 %v402, 2147483648
    %v404 = vmul.f32 %v403, 1.442695
    %v405 = vpow.pop %v404
    %v406 = vadd.f32 %v405, 1.0
    %v407 = vrcp.pop %v406
    %v408 = vmul.f32 %v406, %v407
    %v409 = vsub.f32 1.0, %v408
    %v410 = vmul.f32 %v407, %v409
    %v411 = vadd.f32 %v407, %v410
    %vm412 = vweird.f32 %v406
    %vm413 = vweird.f32 %v407
    %vm414 = vmor %vm412, %vm413
    %v415 = vsel %vm414, %v407, %v411
    %v416 = vand.u32 2147483647, %v406
    %vm417 = vcmp.eq.f32.partialorder %v416, 8.507059e+37
    %v418 = vand.u32 %v406, 2147483648
    %v419 = vor.u32 1.1754944e-38, %v418
    %v420 = vsel %vm417, %v419, %v415
    %v421 = vmul.f32 1.0, %v420
    %v422 = vadd.f32 %v400, %v215
    %424 = vrot.lane.b32.xlu0 %v422, 64
    %v425 = vpop.permute.xlu0 %424
    %v427 = vmul.f32 %v421, %v425
    %429 = vrot.lane.b32.xlu0 %v427, 64
    %v430 = vpop.permute.xlu0 %429
    %v432 = vadd.f32 %v379, %v430
    %v433 = vtanh.pop %v432
    %v434 = vsub.f32 1.0, %v421
    %436 = vrot.lane.b32.xlu0 %v433, 96
    %v437 = vpop.permute.xlu0 %436
    %v439 = vmul.f32 %v434, %v437
    %v440 = vmul.f32 %v421, %v373
    %v441 = vadd.f32 %v439, %v440
    %443 = vrot.lane.b32.xlu0 %v441, 96
    %v444 = vpop.permute.xlu0 %443
    %446 = vst.msk [vmem:[%s9 + $0x6] sm:$0x3] %vm241, %v444
    %v447 = vld [vmem:[#allocation2 + $0x8] sm:$0x3]
    %v448 = vsel %vm168, %v444, 0
    %450 = vmatpush.msra.mxu0 0.0
    %451 = vmatpush.msra.mxu0 0.0
    %452 = vmatpush.msra.mxu0 0.0
    %453 = vmatpush.msra.mxu0 0.0
    %454 = vmatpush.msra.mxu0 0.0
    %455 = vmatpush.msra.mxu0 0.0
    %456 = vmatpush.msra.mxu0 0.0
    %457 = vmatpush.msra.mxu0 0.0
    %458 = vmatpush.msra.mxu0 0.0
    %459 = vmatpush.msra.mxu0 0.0
    %460 = vmatpush.msra.mxu0 0.0
    %461 = vmatpush.msra.mxu0 0.0
    %462 = vmatpush.msra.mxu0 %v122
    %463 = vmatpush.msra.mxu0 %v121
    %464 = vmatpush.msra.mxu0 %v120
    %465 = vmatpush.msra.mxu0 %v119
    %466 = vmatmul.f32.gmra.mxu0 %v448
    %v467 = vpop.f32.mrf.mxu0
    %v468 = vadd.f32 0.0, %v467
    %469 = vdwg.mxu0
    %v470 = vadd.f32 %v447, %v468
    %v471 = vxor.u32 %v470, 2147483648
    %v472 = vmul.f32 %v471, 1.442695
    %v473 = vpow.pop %v472
    %v474 = vadd.f32 %v473, 1.0
    %v475 = vrcp.pop %v474
    %v476 = vmul.f32 %v474, %v475
    %v477 = vsub.f32 1.0, %v476
    %v478 = vmul.f32 %v475, %v477
    %v479 = vadd.f32 %v475, %v478
    %vm480 = vweird.f32 %v474
    %vm481 = vweird.f32 %v475
    %vm482 = vmor %vm480, %vm481
    %v483 = vsel %vm482, %v475, %v479
    %v484 = vand.u32 2147483647, %v474
    %vm485 = vcmp.eq.f32.partialorder %v484, 8.507059e+37
    %v486 = vand.u32 %v474, 2147483648
    %v487 = vor.u32 1.1754944e-38, %v486
    %v488 = vsel %vm485, %v487, %v483
    %v489 = vmul.f32 1.0, %v488
    %v490 = vadd.f32 %v468, %v215
    %492 = vrot.lane.b32.xlu0 %v490, 64
    %v493 = vpop.permute.xlu0 %492
    %v495 = vmul.f32 %v489, %v493
    %497 = vrot.lane.b32.xlu0 %v495, 64
    %v498 = vpop.permute.xlu0 %497
    %v500 = vadd.f32 %v447, %v498
    %v501 = vtanh.pop %v500
    %v502 = vsub.f32 1.0, %v489
    %504 = vrot.lane.b32.xlu0 %v501, 96
    %v505 = vpop.permute.xlu0 %504
    %v507 = vmul.f32 %v502, %v505
    %v508 = vmul.f32 %v489, %v441
    %v509 = vadd.f32 %v507, %v508
    %511 = vrot.lane.b32.xlu0 %v509, 96
    %v512 = vpop.permute.xlu0 %511
    %514 = vst.msk [vmem:[%s9 + $0x8] sm:$0x3] %vm241, %v512
    %v515 = vld [vmem:[#allocation2 + $0xa] sm:$0x3]
    %v516 = vsel %vm168, %v512, 0
    %518 = vmatpush.msra.mxu0 0.0
    %519 = vmatpush.msra.mxu0 0.0
    %520 = vmatpush.msra.mxu0 0.0
    %521 = vmatpush.msra.mxu0 0.0
    %522 = vmatpush.msra.mxu0 0.0
    %523 = vmatpush.msra.mxu0 0.0
    %524 = vmatpush.msra.mxu0 0.0
    %525 = vmatpush.msra.mxu0 0.0
    %526 = vmatpush.msra.mxu0 0.0
    %527 = vmatpush.msra.mxu0 0.0
    %528 = vmatpush.msra.mxu0 0.0
    %529 = vmatpush.msra.mxu0 0.0
    %530 = vmatpush.msra.mxu0 %v122
    %531 = vmatpush.msra.mxu0 %v121
    %532 = vmatpush.msra.mxu0 %v120
    %533 = vmatpush.msra.mxu0 %v119
    %534 = vmatmul.f32.gmra.mxu0 %v516
    %v535 = vpop.f32.mrf.mxu0
    %v536 = vadd.f32 0.0, %v535
    %537 = vdwg.mxu0
    %v538 = vadd.f32 %v515, %v536
    %v539 = vxor.u32 %v538, 2147483648
    %v540 = vmul.f32 %v539, 1.442695
    %v541 = vpow.pop %v540
    %v542 = vadd.f32 %v541, 1.0
    %v543 = vrcp.pop %v542
    %v544 = vmul.f32 %v542, %v543
    %v545 = vsub.f32 1.0, %v544
    %v546 = vmul.f32 %v543, %v545
    %v547 = vadd.f32 %v543, %v546
    %vm548 = vweird.f32 %v542
    %vm549 = vweird.f32 %v543
    %vm550 = vmor %vm548, %vm549
    %v551 = vsel %vm550, %v543, %v547
    %v552 = vand.u32 2147483647, %v542
    %vm553 = vcmp.eq.f32.partialorder %v552, 8.507059e+37
    %v554 = vand.u32 %v542, 2147483648
    %v555 = vor.u32 1.1754944e-38, %v554
    %v556 = vsel %vm553, %v555, %v551
    %v557 = vmul.f32 1.0, %v556
    %v558 = vadd.f32 %v536, %v215
    %560 = vrot.lane.b32.xlu0 %v558, 64
    %v561 = vpop.permute.xlu0 %560
    %v563 = vmul.f32 %v557, %v561
    %565 = vrot.lane.b32.xlu0 %v563, 64
    %v566 = vpop.permute.xlu0 %565
    %v568 = vadd.f32 %v515, %v566
    %v569 = vtanh.pop %v568
    %v570 = vsub.f32 1.0, %v557
    %572 = vrot.lane.b32.xlu0 %v569, 96
    %v573 = vpop.permute.xlu0 %572
    %v575 = vmul.f32 %v570, %v573
    %v576 = vmul.f32 %v557, %v509
    %v577 = vadd.f32 %v575, %v576
    %579 = vrot.lane.b32.xlu0 %v577, 96
    %v580 = vpop.permute.xlu0 %579
    %582 = vst.msk [vmem:[%s9 + $0xa] sm:$0x3] %vm241, %v580
    %v583 = vld [vmem:[#allocation2 + $0xc] sm:$0x3]
    %v584 = vsel %vm168, %v580, 0
    %586 = vmatpush.msra.mxu0 0.0
    %587 = vmatpush.msra.mxu0 0.0
    %588 = vmatpush.msra.mxu0 0.0
    %589 = vmatpush.msra.mxu0 0.0
    %590 = vmatpush.msra.mxu0 0.0
    %591 = vmatpush.msra.mxu0 0.0
    %592 = vmatpush.msra.mxu0 0.0
    %593 = vmatpush.msra.mxu0 0.0
    %594 = vmatpush.msra.mxu0 0.0
    %595 = vmatpush.msra.mxu0 0.0
    %596 = vmatpush.msra.mxu0 0.0
    %597 = vmatpush.msra.mxu0 0.0
    %598 = vmatpush.msra.mxu0 %v122
    %599 = vmatpush.msra.mxu0 %v121
    %600 = vmatpush.msra.mxu0 %v120
    %601 = vmatpush.msra.mxu0 %v119
    %602 = vmatmul.f32.gmra.mxu0 %v584
    %v603 = vpop.f32.mrf.mxu0
    %v604 = vadd.f32 0.0, %v603
    %605 = vdwg.mxu0
    %v606 = vadd.f32 %v583, %v604
    %v607 = vxor.u32 %v606, 2147483648
    %v608 = vmul.f32 %v607, 1.442695
    %v609 = vpow.pop %v608
    %v610 = vadd.f32 %v609, 1.0
    %v611 = vrcp.pop %v610
    %v612 = vmul.f32 %v610, %v611
    %v613 = vsub.f32 1.0, %v612
    %v614 = vmul.f32 %v611, %v613
    %v615 = vadd.f32 %v611, %v614
    %vm616 = vweird.f32 %v610
    %vm617 = vweird.f32 %v611
    %vm618 = vmor %vm616, %vm617
    %v619 = vsel %vm618, %v611, %v615
    %v620 = vand.u32 2147483647, %v610
    %vm621 = vcmp.eq.f32.partialorder %v620, 8.507059e+37
    %v622 = vand.u32 %v610, 2147483648
    %v623 = vor.u32 1.1754944e-38, %v622
    %v624 = vsel %vm621, %v623, %v619
    %v625 = vmul.f32 1.0, %v624
    %v626 = vadd.f32 %v604, %v215
    %628 = vrot.lane.b32.xlu0 %v626, 64
    %v629 = vpop.permute.xlu0 %628
    %v631 = vmul.f32 %v625, %v629
    %633 = vrot.lane.b32.xlu0 %v631, 64
    %v634 = vpop.permute.xlu0 %633
    %v636 = vadd.f32 %v583, %v634
    %v637 = vtanh.pop %v636
    %v638 = vsub.f32 1.0, %v625
    %640 = vrot.lane.b32.xlu0 %v637, 96
    %v641 = vpop.permute.xlu0 %640
    %v643 = vmul.f32 %v638, %v641
    %v644 = vmul.f32 %v625, %v577
    %v645 = vadd.f32 %v643, %v644
    %647 = vrot.lane.b32.xlu0 %v645, 96
    %v648 = vpop.permute.xlu0 %647
    %650 = vst.msk [vmem:[%s9 + $0xc] sm:$0x3] %vm241, %v648
    %v651 = vld [vmem:[#allocation2 + $0xe] sm:$0x3]
    %v652 = vsel %vm168, %v648, 0
    %654 = vmatpush.msra.mxu0 0.0
    %655 = vmatpush.msra.mxu0 0.0
    %656 = vmatpush.msra.mxu0 0.0
    %657 = vmatpush.msra.mxu0 0.0
    %658 = vmatpush.msra.mxu0 0.0
    %659 = vmatpush.msra.mxu0 0.0
    %660 = vmatpush.msra.mxu0 0.0
    %661 = vmatpush.msra.mxu0 0.0
    %662 = vmatpush.msra.mxu0 0.0
    %663 = vmatpush.msra.mxu0 0.0
    %664 = vmatpush.msra.mxu0 0.0
    %665 = vmatpush.msra.mxu0 0.0
    %666 = vmatpush.msra.mxu0 %v122
    %667 = vmatpush.msra.mxu0 %v121
    %668 = vmatpush.msra.mxu0 %v120
    %669 = vmatpush.msra.mxu0 %v119
    %670 = vmatmul.f32.gmra.mxu0 %v652
    %v671 = vpop.f32.mrf.mxu0
    %v672 = vadd.f32 0.0, %v671
    %673 = vdwg.mxu0
    %v674 = vadd.f32 %v651, %v672
    %v675 = vxor.u32 %v674, 2147483648
    %v676 = vmul.f32 %v675, 1.442695
    %v677 = vpow.pop %v676
    %v678 = vadd.f32 %v677, 1.0
    %v679 = vrcp.pop %v678
    %v680 = vmul.f32 %v678, %v679
    %v681 = vsub.f32 1.0, %v680
    %v682 = vmul.f32 %v679, %v681
    %v683 = vadd.f32 %v679, %v682
    %vm684 = vweird.f32 %v678
    %vm685 = vweird.f32 %v679
    %vm686 = vmor %vm684, %vm685
    %v687 = vsel %vm686, %v679, %v683
    %v688 = vand.u32 2147483647, %v678
    %vm689 = vcmp.eq.f32.partialorder %v688, 8.507059e+37
    %v690 = vand.u32 %v678, 2147483648
    %v691 = vor.u32 1.1754944e-38, %v690
    %v692 = vsel %vm689, %v691, %v687
    %v693 = vmul.f32 1.0, %v692
    %v694 = vadd.f32 %v672, %v215
    %696 = vrot.lane.b32.xlu0 %v694, 64
    %v697 = vpop.permute.xlu0 %696
    %v699 = vmul.f32 %v693, %v697
    %701 = vrot.lane.b32.xlu0 %v699, 64
    %v702 = vpop.permute.xlu0 %701
    %v704 = vadd.f32 %v651, %v702
    %v705 = vtanh.pop %v704
    %v706 = vsub.f32 1.0, %v693
    %708 = vrot.lane.b32.xlu0 %v705, 96
    %v709 = vpop.permute.xlu0 %708
    %v711 = vmul.f32 %v706, %v709
    %v712 = vmul.f32 %v693, %v645
    %v713 = vadd.f32 %v711, %v712
    %715 = vrot.lane.b32.xlu0 %v713, 96
    %v716 = vpop.permute.xlu0 %715
    %718 = vst.msk [vmem:[%s9 + $0xe] sm:$0x3] %vm241, %v716
    %v719 = vld [vmem:[%s5] sm:$0xff]
    %v720 = vld [vmem:[%s5 + $0x8] sm:$0xff]
    %v721 = vld [vmem:[%s5 + $0x10] sm:$0xff]
    %v722 = vld [vmem:[%s5 + $0x18] sm:$0xff]
    %v723 = vld [vmem:[#allocation8] sm:$0xff]
    %v724 = vld [vmem:[#allocation8 + $0x8] sm:$0xff]
    %v725 = vld [vmem:[#allocation8 + $0x10] sm:$0xff]
    %v726 = vld [vmem:[#allocation8 + $0x18] sm:$0xff]
    %v727 = vld [vmem:[#allocation10] sm:$0x1]
    %v728 = vld [vmem:[#allocation11] sm:$0x1]
    %v729 = vld [vmem:[%s9] sm:$0xff]
    %v730 = vld [vmem:[%s9 + $0x8] sm:$0xff]
    %v732 = vperm.slane %v727, 0
    %v735 = vsel %vm168, %v729, 0
    %v738 = vsel %vm168, %v730, 0
    %740 = vmatpush.msra.mxu0 0.0
    %741 = vmatpush.msra.mxu0 0.0
    %742 = vmatpush.msra.mxu0 0.0
    %743 = vmatpush.msra.mxu0 0.0
    %744 = vmatpush.msra.mxu0 0.0
    %745 = vmatpush.msra.mxu0 0.0
    %746 = vmatpush.msra.mxu0 0.0
    %747 = vmatpush.msra.mxu0 0.0
    %748 = vmatpush.msra.mxu0 0.0
    %749 = vmatpush.msra.mxu0 0.0
    %750 = vmatpush.msra.mxu0 0.0
    %751 = vmatpush.msra.mxu0 0.0
    %752 = vmatpush.msra.mxu0 %v722
    %753 = vmatpush.msra.mxu0 %v721
    %754 = vmatpush.msra.mxu0 %v720
    %755 = vmatpush.msra.mxu0 %v719
    %756 = vmatmul.f32.gmra.mxu0 %v735
    %v757 = vpop.f32.mrf.mxu0
    %v758 = vadd.f32 %v732, %v757
    %759 = vmatmul.f32.gmra.mxu0 %v738
    %v760 = vpop.f32.mrf.mxu0
    %v761 = vadd.f32 %v732, %v760
    %762 = vdwg.mxu0
    %763 = vst.msk [vmem:[#allocation2] sm:$0xff] %vm164, %v758
    %764 = vst.msk [vmem:[#allocation2 + $0x8] sm:$0xff] %vm164, %v761
    %v765 = vld [vmem:[#allocation2] sm:$0x3]
    %766 = vmatpush.msra.mxu0 0.0
    %767 = vmatpush.msra.mxu0 0.0
    %768 = vmatpush.msra.mxu0 0.0
    %769 = vmatpush.msra.mxu0 0.0
    %770 = vmatpush.msra.mxu0 0.0
    %771 = vmatpush.msra.mxu0 0.0
    %772 = vmatpush.msra.mxu0 0.0
    %773 = vmatpush.msra.mxu0 0.0
    %774 = vmatpush.msra.mxu0 0.0
    %775 = vmatpush.msra.mxu0 0.0
    %776 = vmatpush.msra.mxu0 0.0
    %777 = vmatpush.msra.mxu0 0.0
    %778 = vmatpush.msra.mxu0 %v726
    %779 = vmatpush.msra.mxu0 %v725
    %780 = vmatpush.msra.mxu0 %v724
    %781 = vmatpush.msra.mxu0 %v723
    %782 = vmatmul.f32.gmra.mxu0 %v170
    %v783 = vpop.f32.mrf.mxu0
    %v784 = vadd.f32 0.0, %v783
    %785 = vdwg.mxu0
    %v786 = vadd.f32 %v765, %v784
    %v787 = vxor.u32 %v786, 2147483648
    %v788 = vmul.f32 %v787, 1.442695
    %v789 = vpow.pop %v788
    %v790 = vadd.f32 %v789, 1.0
    %v791 = vrcp.pop %v790
    %v792 = vmul.f32 %v790, %v791
    %v793 = vsub.f32 1.0, %v792
    %v794 = vmul.f32 %v791, %v793
    %v795 = vadd.f32 %v791, %v794
    %vm796 = vweird.f32 %v790
    %vm797 = vweird.f32 %v791
    %vm798 = vmor %vm796, %vm797
    %v799 = vsel %vm798, %v791, %v795
    %v800 = vand.u32 2147483647, %v790
    %vm801 = vcmp.eq.f32.partialorder %v800, 8.507059e+37
    %v802 = vand.u32 %v790, 2147483648
    %v803 = vor.u32 1.1754944e-38, %v802
    %v804 = vsel %vm801, %v803, %v799
    %v805 = vmul.f32 1.0, %v804
    %v807 = vperm.slane %v728, 0
    %808 = vrot.lane.b32.xlu0 %v807, 64
    %v809 = vpop.permute.xlu0 %808
    %v811 = vadd.f32 %v784, %v809
    %813 = vrot.lane.b32.xlu0 %v811, 64
    %v814 = vpop.permute.xlu0 %813
    %v816 = vmul.f32 %v805, %v814
    %818 = vrot.lane.b32.xlu0 %v816, 64
    %v819 = vpop.permute.xlu0 %818
    %v821 = vadd.f32 %v765, %v819
    %v822 = vtanh.pop %v821
    %v823 = vsub.f32 1.0, %v805
    %825 = vrot.lane.b32.xlu0 %v822, 96
    %v826 = vpop.permute.xlu0 %825
    %v828 = vmul.f32 %v823, %v826
    %v829 = vmul.f32 %v805, 0.0
    %v830 = vadd.f32 %v828, %v829
    %832 = vrot.lane.b32.xlu0 %v830, 96
    %v833 = vpop.permute.xlu0 %832
    %835 = vst.msk [vmem:[%s9] sm:$0x3] %vm241, %v833
    %v836 = vld [vmem:[#allocation2 + $0x2] sm:$0x3]
    %v837 = vsel %vm168, %v833, 0
    %839 = vmatpush.msra.mxu0 0.0
    %840 = vmatpush.msra.mxu0 0.0
    %841 = vmatpush.msra.mxu0 0.0
    %842 = vmatpush.msra.mxu0 0.0
    %843 = vmatpush.msra.mxu0 0.0
    %844 = vmatpush.msra.mxu0 0.0
    %845 = vmatpush.msra.mxu0 0.0
    %846 = vmatpush.msra.mxu0 0.0
    %847 = vmatpush.msra.mxu0 0.0
    %848 = vmatpush.msra.mxu0 0.0
    %849 = vmatpush.msra.mxu0 0.0
    %850 = vmatpush.msra.mxu0 0.0
    %851 = vmatpush.msra.mxu0 %v726
    %852 = vmatpush.msra.mxu0 %v725
    %853 = vmatpush.msra.mxu0 %v724
    %854 = vmatpush.msra.mxu0 %v723
    %855 = vmatmul.f32.gmra.mxu0 %v837
    %v856 = vpop.f32.mrf.mxu0
    %v857 = vadd.f32 0.0, %v856
    %858 = vdwg.mxu0
    %v859 = vadd.f32 %v836, %v857
    %v860 = vxor.u32 %v859, 2147483648
    %v861 = vmul.f32 %v860, 1.442695
    %v862 = vpow.pop %v861
    %v863 = vadd.f32 %v862, 1.0
    %v864 = vrcp.pop %v863
    %v865 = vmul.f32 %v863, %v864
    %v866 = vsub.f32 1.0, %v865
    %v867 = vmul.f32 %v864, %v866
    %v868 = vadd.f32 %v864, %v867
    %vm869 = vweird.f32 %v863
    %vm870 = vweird.f32 %v864
    %vm871 = vmor %vm869, %vm870
    %v872 = vsel %vm871, %v864, %v868
    %v873 = vand.u32 2147483647, %v863
    %vm874 = vcmp.eq.f32.partialorder %v873, 8.507059e+37
    %v875 = vand.u32 %v863, 2147483648
    %v876 = vor.u32 1.1754944e-38, %v875
    %v877 = vsel %vm874, %v876, %v872
    %v878 = vmul.f32 1.0, %v877
    %v879 = vadd.f32 %v857, %v809
    %881 = vrot.lane.b32.xlu0 %v879, 64
    %v882 = vpop.permute.xlu0 %881
    %v884 = vmul.f32 %v878, %v882
    %886 = vrot.lane.b32.xlu0 %v884, 64
    %v887 = vpop.permute.xlu0 %886
    %v889 = vadd.f32 %v836, %v887
    %v890 = vtanh.pop %v889
    %v891 = vsub.f32 1.0, %v878
    %893 = vrot.lane.b32.xlu0 %v890, 96
    %v894 = vpop.permute.xlu0 %893
    %v896 = vmul.f32 %v891, %v894
    %v897 = vmul.f32 %v878, %v830
    %v898 = vadd.f32 %v896, %v897
    %900 = vrot.lane.b32.xlu0 %v898, 96
    %v901 = vpop.permute.xlu0 %900
    %903 = vst.msk [vmem:[%s9 + $0x2] sm:$0x3] %vm241, %v901
    %v904 = vld [vmem:[#allocation2 + $0x4] sm:$0x3]
    %v905 = vsel %vm168, %v901, 0
    %907 = vmatpush.msra.mxu0 0.0
    %908 = vmatpush.msra.mxu0 0.0
    %909 = vmatpush.msra.mxu0 0.0
    %910 = vmatpush.msra.mxu0 0.0
    %911 = vmatpush.msra.mxu0 0.0
    %912 = vmatpush.msra.mxu0 0.0
    %913 = vmatpush.msra.mxu0 0.0
    %914 = vmatpush.msra.mxu0 0.0
    %915 = vmatpush.msra.mxu0 0.0
    %916 = vmatpush.msra.mxu0 0.0
    %917 = vmatpush.msra.mxu0 0.0
    %918 = vmatpush.msra.mxu0 0.0
    %919 = vmatpush.msra.mxu0 %v726
    %920 = vmatpush.msra.mxu0 %v725
    %921 = vmatpush.msra.mxu0 %v724
    %922 = vmatpush.msra.mxu0 %v723
    %923 = vmatmul.f32.gmra.mxu0 %v905
    %v924 = vpop.f32.mrf.mxu0
    %v925 = vadd.f32 0.0, %v924
    %926 = vdwg.mxu0
    %v927 = vadd.f32 %v904, %v925
    %v928 = vxor.u32 %v927, 2147483648
    %v929 = vmul.f32 %v928, 1.442695
    %v930 = vpow.pop %v929
    %v931 = vadd.f32 %v930, 1.0
    %v932 = vrcp.pop %v931
    %v933 = vmul.f32 %v931, %v932
    %v934 = vsub.f32 1.0, %v933
    %v935 = vmul.f32 %v932, %v934
    %v936 = vadd.f32 %v932, %v935
    %vm937 = vweird.f32 %v931
    %vm938 = vweird.f32 %v932
    %vm939 = vmor %vm937, %vm938
    %v940 = vsel %vm939, %v932, %v936
    %v941 = vand.u32 2147483647, %v931
    %vm942 = vcmp.eq.f32.partialorder %v941, 8.507059e+37
    %v943 = vand.u32 %v931, 2147483648
    %v944 = vor.u32 1.1754944e-38, %v943
    %v945 = vsel %vm942, %v944, %v940
    %v946 = vmul.f32 1.0, %v945
    %v947 = vadd.f32 %v925, %v809
    %949 = vrot.lane.b32.xlu0 %v947, 64
    %v950 = vpop.permute.xlu0 %949
    %v952 = vmul.f32 %v946, %v950
    %954 = vrot.lane.b32.xlu0 %v952, 64
    %v955 = vpop.permute.xlu0 %954
    %v957 = vadd.f32 %v904, %v955
    %v958 = vtanh.pop %v957
    %v959 = vsub.f32 1.0, %v946
    %961 = vrot.lane.b32.xlu0 %v958, 96
    %v962 = vpop.permute.xlu0 %961
    %v964 = vmul.f32 %v959, %v962
    %v965 = vmul.f32 %v946, %v898
    %v966 = vadd.f32 %v964, %v965
    %968 = vrot.lane.b32.xlu0 %v966, 96
    %v969 = vpop.permute.xlu0 %968
    %971 = vst.msk [vmem:[%s9 + $0x4] sm:$0x3] %vm241, %v969
    %v972 = vld [vmem:[#allocation2 + $0x6] sm:$0x3]
    %v973 = vsel %vm168, %v969, 0
    %975 = vmatpush.msra.mxu0 0.0
    %976 = vmatpush.msra.mxu0 0.0
    %977 = vmatpush.msra.mxu0 0.0
    %978 = vmatpush.msra.mxu0 0.0
    %979 = vmatpush.msra.mxu0 0.0
    %980 = vmatpush.msra.mxu0 0.0
    %981 = vmatpush.msra.mxu0 0.0
    %982 = vmatpush.msra.mxu0 0.0
    %983 = vmatpush.msra.mxu0 0.0
    %984 = vmatpush.msra.mxu0 0.0
    %985 = vmatpush.msra.mxu0 0.0
    %986 = vmatpush.msra.mxu0 0.0
    %987 = vmatpush.msra.mxu0 %v726
    %988 = vmatpush.msra.mxu0 %v725
    %989 = vmatpush.msra.mxu0 %v724
    %990 = vmatpush.msra.mxu0 %v723
    %991 = vmatmul.f32.gmra.mxu0 %v973
    %v992 = vpop.f32.mrf.mxu0
    %v993 = vadd.f32 0.0, %v992
    %994 = vdwg.mxu0
    %v995 = vadd.f32 %v972, %v993
    %v996 = vxor.u32 %v995, 2147483648
    %v997 = vmul.f32 %v996, 1.442695
    %v998 = vpow.pop %v997
    %v999 = vadd.f32 %v998, 1.0
    %v1000 = vrcp.pop %v999
    %v1001 = vmul.f32 %v999, %v1000
    %v1002 = vsub.f32 1.0, %v1001
    %v1003 = vmul.f32 %v1000, %v1002
    %v1004 = vadd.f32 %v1000, %v1003
    %vm1005 = vweird.f32 %v999
    %vm1006 = vweird.f32 %v1000
    %vm1007 = vmor %vm1005, %vm1006
    %v1008 = vsel %vm1007, %v1000, %v1004
    %v1009 = vand.u32 2147483647, %v999
    %vm1010 = vcmp.eq.f32.partialorder %v1009, 8.507059e+37
    %v1011 = vand.u32 %v999, 2147483648
    %v1012 = vor.u32 1.1754944e-38, %v1011
    %v1013 = vsel %vm1010, %v1012, %v1008
    %v1014 = vmul.f32 1.0, %v1013
    %v1015 = vadd.f32 %v993, %v809
    %1017 = vrot.lane.b32.xlu0 %v1015, 64
    %v1018 = vpop.permute.xlu0 %1017
    %v1020 = vmul.f32 %v1014, %v1018
    %1022 = vrot.lane.b32.xlu0 %v1020, 64
    %v1023 = vpop.permute.xlu0 %1022
    %v1025 = vadd.f32 %v972, %v1023
    %v1026 = vtanh.pop %v1025
    %v1027 = vsub.f32 1.0, %v1014
    %1029 = vrot.lane.b32.xlu0 %v1026, 96
    %v1030 = vpop.permute.xlu0 %1029
    %v1032 = vmul.f32 %v1027, %v1030
    %v1033 = vmul.f32 %v1014, %v966
    %v1034 = vadd.f32 %v1032, %v1033
    %1036 = vrot.lane.b32.xlu0 %v1034, 96
    %v1037 = vpop.permute.xlu0 %1036
    %1039 = vst.msk [vmem:[%s9 + $0x6] sm:$0x3] %vm241, %v1037
    %v1040 = vld [vmem:[#allocation2 + $0x8] sm:$0x3]
    %v1041 = vsel %vm168, %v1037, 0
    %1043 = vmatpush.msra.mxu0 0.0
    %1044 = vmatpush.msra.mxu0 0.0
    %1045 = vmatpush.msra.mxu0 0.0
    %1046 = vmatpush.msra.mxu0 0.0
    %1047 = vmatpush.msra.mxu0 0.0
    %1048 = vmatpush.msra.mxu0 0.0
    %1049 = vmatpush.msra.mxu0 0.0
    %1050 = vmatpush.msra.mxu0 0.0
    %1051 = vmatpush.msra.mxu0 0.0
    %1052 = vmatpush.msra.mxu0 0.0
    %1053 = vmatpush.msra.mxu0 0.0
    %1054 = vmatpush.msra.mxu0 0.0
    %1055 = vmatpush.msra.mxu0 %v726
    %1056 = vmatpush.msra.mxu0 %v725
    %1057 = vmatpush.msra.mxu0 %v724
    %1058 = vmatpush.msra.mxu0 %v723
    %1059 = vmatmul.f32.gmra.mxu0 %v1041
    %v1060 = vpop.f32.mrf.mxu0
    %v1061 = vadd.f32 0.0, %v1060
    %1062 = vdwg.mxu0
    %v1063 = vadd.f32 %v1040, %v1061
    %v1064 = vxor.u32 %v1063, 2147483648
    %v1065 = vmul.f32 %v1064, 1.442695
    %v1066 = vpow.pop %v1065
    %v1067 = vadd.f32 %v1066, 1.0
    %v1068 = vrcp.pop %v1067
    %v1069 = vmul.f32 %v1067, %v1068
    %v1070 = vsub.f32 1.0, %v1069
    %v1071 = vmul.f32 %v1068, %v1070
    %v1072 = vadd.f32 %v1068, %v1071
    %vm1073 = vweird.f32 %v1067
    %vm1074 = vweird.f32 %v1068
    %vm1075 = vmor %vm1073, %vm1074
    %v1076 = vsel %vm1075, %v1068, %v1072
    %v1077 = vand.u32 2147483647, %v1067
    %vm1078 = vcmp.eq.f32.partialorder %v1077, 8.507059e+37
    %v1079 = vand.u32 %v1067, 2147483648
    %v1080 = vor.u32 1.1754944e-38, %v1079
    %v1081 = vsel %vm1078, %v1080, %v1076
    %v1082 = vmul.f32 1.0, %v1081
    %v1083 = vadd.f32 %v1061, %v809
    %1085 = vrot.lane.b32.xlu0 %v1083, 64
    %v1086 = vpop.permute.xlu0 %1085
    %v1088 = vmul.f32 %v1082, %v1086
    %1090 = vrot.lane.b32.xlu0 %v1088, 64
    %v1091 = vpop.permute.xlu0 %1090
    %v1093 = vadd.f32 %v1040, %v1091
    %v1094 = vtanh.pop %v1093
    %v1095 = vsub.f32 1.0, %v1082
    %1097 = vrot.lane.b32.xlu0 %v1094, 96
    %v1098 = vpop.permute.xlu0 %1097
    %v1100 = vmul.f32 %v1095, %v1098
    %v1101 = vmul.f32 %v1082, %v1034
    %v1102 = vadd.f32 %v1100, %v1101
    %1104 = vrot.lane.b32.xlu0 %v1102, 96
    %v1105 = vpop.permute.xlu0 %1104
    %1107 = vst.msk [vmem:[%s9 + $0x8] sm:$0x3] %vm241, %v1105
    %v1108 = vld [vmem:[#allocation2 + $0xa] sm:$0x3]
    %v1109 = vsel %vm168, %v1105, 0
    %1111 = vmatpush.msra.mxu0 0.0
    %1112 = vmatpush.msra.mxu0 0.0
    %1113 = vmatpush.msra.mxu0 0.0
    %1114 = vmatpush.msra.mxu0 0.0
    %1115 = vmatpush.msra.mxu0 0.0
    %1116 = vmatpush.msra.mxu0 0.0
    %1117 = vmatpush.msra.mxu0 0.0
    %1118 = vmatpush.msra.mxu0 0.0
    %1119 = vmatpush.msra.mxu0 0.0
    %1120 = vmatpush.msra.mxu0 0.0
    %1121 = vmatpush.msra.mxu0 0.0
    %1122 = vmatpush.msra.mxu0 0.0
    %1123 = vmatpush.msra.mxu0 %v726
    %1124 = vmatpush.msra.mxu0 %v725
    %1125 = vmatpush.msra.mxu0 %v724
    %1126 = vmatpush.msra.mxu0 %v723
    %1127 = vmatmul.f32.gmra.mxu0 %v1109
    %v1128 = vpop.f32.mrf.mxu0
    %v1129 = vadd.f32 0.0, %v1128
    %1130 = vdwg.mxu0
    %v1131 = vadd.f32 %v1108, %v1129
    %v1132 = vxor.u32 %v1131, 2147483648
    %v1133 = vmul.f32 %v1132, 1.442695
    %v1134 = vpow.pop %v1133
    %v1135 = vadd.f32 %v1134, 1.0
    %v1136 = vrcp.pop %v1135
    %v1137 = vmul.f32 %v1135, %v1136
    %v1138 = vsub.f32 1.0, %v1137
    %v1139 = vmul.f32 %v1136, %v1138
    %v1140 = vadd.f32 %v1136, %v1139
    %vm1141 = vweird.f32 %v1135
    %vm1142 = vweird.f32 %v1136
    %vm1143 = vmor %vm1141, %vm1142
    %v1144 = vsel %vm1143, %v1136, %v1140
    %v1145 = vand.u32 2147483647, %v1135
    %vm1146 = vcmp.eq.f32.partialorder %v1145, 8.507059e+37
    %v1147 = vand.u32 %v1135, 2147483648
    %v1148 = vor.u32 1.1754944e-38, %v1147
    %v1149 = vsel %vm1146, %v1148, %v1144
    %v1150 = vmul.f32 1.0, %v1149
    %v1151 = vadd.f32 %v1129, %v809
    %1153 = vrot.lane.b32.xlu0 %v1151, 64
    %v1154 = vpop.permute.xlu0 %1153
    %v1156 = vmul.f32 %v1150, %v1154
    %1158 = vrot.lane.b32.xlu0 %v1156, 64
    %v1159 = vpop.permute.xlu0 %1158
    %v1161 = vadd.f32 %v1108, %v1159
    %v1162 = vtanh.pop %v1161
    %v1163 = vsub.f32 1.0, %v1150
    %1165 = vrot.lane.b32.xlu0 %v1162, 96
    %v1166 = vpop.permute.xlu0 %1165
    %v1168 = vmul.f32 %v1163, %v1166
    %v1169 = vmul.f32 %v1150, %v1102
    %v1170 = vadd.f32 %v1168, %v1169
    %1172 = vrot.lane.b32.xlu0 %v1170, 96
    %v1173 = vpop.permute.xlu0 %1172
    %1175 = vst.msk [vmem:[%s9 + $0xa] sm:$0x3] %vm241, %v1173
    %v1176 = vld [vmem:[#allocation2 + $0xc] sm:$0x3]
    %v1177 = vsel %vm168, %v1173, 0
    %1179 = vmatpush.msra.mxu0 0.0
    %1180 = vmatpush.msra.mxu0 0.0
    %1181 = vmatpush.msra.mxu0 0.0
    %1182 = vmatpush.msra.mxu0 0.0
    %1183 = vmatpush.msra.mxu0 0.0
    %1184 = vmatpush.msra.mxu0 0.0
    %1185 = vmatpush.msra.mxu0 0.0
    %1186 = vmatpush.msra.mxu0 0.0
    %1187 = vmatpush.msra.mxu0 0.0
    %1188 = vmatpush.msra.mxu0 0.0
    %1189 = vmatpush.msra.mxu0 0.0
    %1190 = vmatpush.msra.mxu0 0.0
    %1191 = vmatpush.msra.mxu0 %v726
    %1192 = vmatpush.msra.mxu0 %v725
    %1193 = vmatpush.msra.mxu0 %v724
    %1194 = vmatpush.msra.mxu0 %v723
    %1195 = vmatmul.f32.gmra.mxu0 %v1177
    %v1196 = vpop.f32.mrf.mxu0
    %v1197 = vadd.f32 0.0, %v1196
    %1198 = vdwg.mxu0
    %v1199 = vadd.f32 %v1176, %v1197
    %v1200 = vxor.u32 %v1199, 2147483648
    %v1201 = vmul.f32 %v1200, 1.442695
    %v1202 = vpow.pop %v1201
    %v1203 = vadd.f32 %v1202, 1.0
    %v1204 = vrcp.pop %v1203
    %v1205 = vmul.f32 %v1203, %v1204
    %v1206 = vsub.f32 1.0, %v1205
    %v1207 = vmul.f32 %v1204, %v1206
    %v1208 = vadd.f32 %v1204, %v1207
    %vm1209 = vweird.f32 %v1203
    %vm1210 = vweird.f32 %v1204
    %vm1211 = vmor %vm1209, %vm1210
    %v1212 = vsel %vm1211, %v1204, %v1208
    %v1213 = vand.u32 2147483647, %v1203
    %vm1214 = vcmp.eq.f32.partialorder %v1213, 8.507059e+37
    %v1215 = vand.u32 %v1203, 2147483648
    %v1216 = vor.u32 1.1754944e-38, %v1215
    %v1217 = vsel %vm1214, %v1216, %v1212
    %v1218 = vmul.f32 1.0, %v1217
    %v1219 = vadd.f32 %v1197, %v809
    %1221 = vrot.lane.b32.xlu0 %v1219, 64
    %v1222 = vpop.permute.xlu0 %1221
    %v1224 = vmul.f32 %v1218, %v1222
    %1226 = vrot.lane.b32.xlu0 %v1224, 64
    %v1227 = vpop.permute.xlu0 %1226
    %v1229 = vadd.f32 %v1176, %v1227
    %v1230 = vtanh.pop %v1229
    %v1231 = vsub.f32 1.0, %v1218
    %1233 = vrot.lane.b32.xlu0 %v1230, 96
    %v1234 = vpop.permute.xlu0 %1233
    %v1236 = vmul.f32 %v1231, %v1234
    %v1237 = vmul.f32 %v1218, %v1170
    %v1238 = vadd.f32 %v1236, %v1237
    %1240 = vrot.lane.b32.xlu0 %v1238, 96
    %v1241 = vpop.permute.xlu0 %1240
    %1243 = vst.msk [vmem:[%s9 + $0xc] sm:$0x3] %vm241, %v1241
    %v1244 = vld [vmem:[#allocation2 + $0xe] sm:$0x3]
    %v1245 = vsel %vm168, %v1241, 0
    %1247 = vmatpush.msra.mxu0 0.0
    %1248 = vmatpush.msra.mxu0 0.0
    %1249 = vmatpush.msra.mxu0 0.0
    %1250 = vmatpush.msra.mxu0 0.0
    %1251 = vmatpush.msra.mxu0 0.0
    %1252 = vmatpush.msra.mxu0 0.0
    %1253 = vmatpush.msra.mxu0 0.0
    %1254 = vmatpush.msra.mxu0 0.0
    %1255 = vmatpush.msra.mxu0 0.0
    %1256 = vmatpush.msra.mxu0 0.0
    %1257 = vmatpush.msra.mxu0 0.0
    %1258 = vmatpush.msra.mxu0 0.0
    %1259 = vmatpush.msra.mxu0 %v726
    %1260 = vmatpush.msra.mxu0 %v725
    %1261 = vmatpush.msra.mxu0 %v724
    %1262 = vmatpush.msra.mxu0 %v723
    %1263 = vmatmul.f32.gmra.mxu0 %v1245
    %v1264 = vpop.f32.mrf.mxu0
    %v1265 = vadd.f32 0.0, %v1264
    %1266 = vdwg.mxu0
    %v1267 = vadd.f32 %v1244, %v1265
    %v1268 = vxor.u32 %v1267, 2147483648
    %v1269 = vmul.f32 %v1268, 1.442695
    %v1270 = vpow.pop %v1269
    %v1271 = vadd.f32 %v1270, 1.0
    %v1272 = vrcp.pop %v1271
    %v1273 = vmul.f32 %v1271, %v1272
    %v1274 = vsub.f32 1.0, %v1273
    %v1275 = vmul.f32 %v1272, %v1274
    %v1276 = vadd.f32 %v1272, %v1275
    %vm1277 = vweird.f32 %v1271
    %vm1278 = vweird.f32 %v1272
    %vm1279 = vmor %vm1277, %vm1278
    %v1280 = vsel %vm1279, %v1272, %v1276
    %v1281 = vand.u32 2147483647, %v1271
    %vm1282 = vcmp.eq.f32.partialorder %v1281, 8.507059e+37
    %v1283 = vand.u32 %v1271, 2147483648
    %v1284 = vor.u32 1.1754944e-38, %v1283
    %v1285 = vsel %vm1282, %v1284, %v1280
    %v1286 = vmul.f32 1.0, %v1285
    %v1287 = vadd.f32 %v1265, %v809
    %1289 = vrot.lane.b32.xlu0 %v1287, 64
    %v1290 = vpop.permute.xlu0 %1289
    %v1292 = vmul.f32 %v1286, %v1290
    %1294 = vrot.lane.b32.xlu0 %v1292, 64
    %v1295 = vpop.permute.xlu0 %1294
    %v1297 = vadd.f32 %v1244, %v1295
    %v1298 = vtanh.pop %v1297
    %v1299 = vsub.f32 1.0, %v1286
    %1301 = vrot.lane.b32.xlu0 %v1298, 96
    %v1302 = vpop.permute.xlu0 %1301
    %v1304 = vmul.f32 %v1299, %v1302
    %v1305 = vmul.f32 %v1286, %v1238
    %v1306 = vadd.f32 %v1304, %v1305
    %1308 = vrot.lane.b32.xlu0 %v1306, 96
    %v1309 = vpop.permute.xlu0 %1308
    %1311 = vst.msk [vmem:[%s9 + $0xe] sm:$0x3] %vm241, %v1309
    // Predicated region
    $region62: #{mod_gru_forward.1} parent=1 // pred_check
      _
    $region63: #{mod_gru_forward.1} parent=1 // pred_check_branch
      %1313 = sbr.rel (0) target = $region65
    $region64: #{mod_gru_forward.1} parent=1 // pred_region
      _
    $region65: #{mod_gru_forward.1} parent=1 // pred_fallthru
      _
    // Predicated region
    $region66: #{mod_gru_forward.1} parent=1 // pred_check
      _
    $region67: #{mod_gru_forward.1} parent=1 // pred_check_branch
      %1315 = sbr.rel (0) target = $region69
    $region68: #{mod_gru_forward.1} parent=1 // pred_region
      _
    $region69: #{mod_gru_forward.1} parent=1 // pred_fallthru
      _
    %1316 = vsyncpa [#allocation4], 1
    %1317 = vsyncpa [#allocation6], 1
    %1318 = vsyncpa [#allocation9], 1
    %1319 = vsyncpa [#allocation12], 1

</llo_original>
